<compile_context>
chip_gen: v7x
topology: tpu7x:2x2x1
jax: 0.10.0
libtpu: 0.0.40
codegen_flags: <defaults>
</compile_context>

<pallas_src>
import functools
import math

import jax
import jax.numpy as jnp
from jax.experimental import pallas as pl
from jax.experimental.pallas import tpu as pltpu


# ----------------------------------------------------------------------------- kernel

def _layer_norm(x, gamma, beta, eps=1e-5):
    mean = jnp.mean(x, axis=-1, keepdims=True)
    centered = x - mean
    var = jnp.mean(centered * centered, axis=-1, keepdims=True)
    return centered * jax.lax.rsqrt(var + eps) * gamma + beta


def encoder_layer_kernel(B, L, H, DEP,
                         x_ref, mask_ref,
                         wqkv_ref, bqkv_ref, wo_ref, bo_ref,
                         w1_ref, b1_ref, w2_ref, b2_ref,
                         g1_ref, be1_ref, g2_ref, be2_ref,
                         out_ref):
    """Single invocation: whole batch resident in VMEM.

    x_ref:    (B*L, D)       f32 activations
    mask_ref: (1|B, L, L)    f32 merged attention mask (1 = attend, 0 = blocked)
    wqkv_ref: (D, 3D) bf16 fused Q|K|V weight; other w*: bf16 (in, out); biases/LN: f32.
    """
    D = H * DEP
    x = x_ref[...]                                    # (B*L, D) f32
    xb = x.astype(jnp.bfloat16)

    # Fused Q|K|V projection: one (B*L, D) @ (D, 3D) MXU matmul, f32 accumulation.
    qkv = jnp.dot(xb, wqkv_ref[...], preferred_element_type=jnp.float32) + bqkv_ref[...]
    qkv = qkv.astype(jnp.bfloat16).reshape(B, L, 3 * D)   # single cast, leading-dim reshape

    # Gather heads into one (H*B, L, DEP) batch axis: H lane slices + a leading concat
    # per tensor (no per-(batch, head) 2-D slicing / stacking).
    def heads(base):
        return jnp.concatenate(
            [qkv[:, :, base + h * DEP: base + (h + 1) * DEP] for h in range(H)], axis=0)

    q3 = heads(0)           # (H*B, L, DEP) bf16, batch axis ordered (head, batch)
    k3 = heads(D)
    v3 = heads(2 * D)

    # Batched attention logits (f32) + in-kernel mask (masked_fill semantics).
    scale = 1.0 / math.sqrt(DEP)
    logits = jnp.einsum('nqd,nkd->nqk', q3, k3,
                        preferred_element_type=jnp.float32) * scale   # (H*B, L, L)
    mask = jnp.broadcast_to(mask_ref[...], (H, B, L, L)).reshape(H * B, L, L)
    logits = jnp.where(mask == 0.0, jnp.float32(-1e9), logits)

    # Softmax in f32; divide moved to the EUP via approx reciprocal.
    m = jnp.max(logits, axis=-1, keepdims=True)
    e = jnp.exp(logits - m)
    w = e * pl.reciprocal(jnp.sum(e, axis=-1, keepdims=True), approx=True)
    # TODO(synk): nn.Dropout (attention weights, dropout1/2, FFN dropout) is an identity
    # in eval mode; training-time stochastic dropout is not implemented.

    ctx = jnp.einsum('nqk,nkd->nqd', w.astype(jnp.bfloat16), v3,
                     preferred_element_type=jnp.float32)              # (H*B, L, DEP)

    # Merge heads back: H leading slices + one lane concat -> (B*L, D).
    ctx2d = jnp.concatenate([ctx[h * B:(h + 1) * B] for h in range(H)],
                            axis=-1).reshape(B * L, D)
    attn_out = jnp.dot(ctx2d.astype(jnp.bfloat16), wo_ref[...],
                       preferred_element_type=jnp.float32) + bo_ref[...]

    # Residual + LayerNorm 1 (f32).
    h1 = _layer_norm(x + attn_out, g1_ref[...], be1_ref[...])

    # Feed-forward: (B*L, D)@(D, DFF) -> ReLU -> (B*L, DFF)@(DFF, D).
    ff = jnp.dot(h1.astype(jnp.bfloat16), w1_ref[...],
                 preferred_element_type=jnp.float32) + b1_ref[...]
    ff = jnp.maximum(ff, 0.0)
    ff2 = jnp.dot(ff.astype(jnp.bfloat16), w2_ref[...],
                  preferred_element_type=jnp.float32) + b2_ref[...]

    # Residual + LayerNorm 2.
    out_ref[...] = _layer_norm(h1 + ff2, g2_ref[...], be2_ref[...])


# ----------------------------------------------------------------------------- wrapper

def merge_mask(mask, key_padding_mask):
    """JAX analogue of the torch merge_mask helper (also tolerates mask=None)."""
    if key_padding_mask is not None:
        kpm = jnp.logical_not(key_padding_mask)[:, None, None, :]
        if mask is None:
            return kpm
        return jnp.logical_and(kpm, mask)
    return mask


def _mask_to_3d(mask, L):
    """Canonicalize the merged mask to (1|B, L, L) float32 (1 = attend, 0 = blocked)."""
    if mask is None:
        return jnp.ones((1, L, L), jnp.float32)
    m = mask.astype(jnp.float32)
    if m.ndim == 2:                                   # (L, L) src_mask only
        return m.reshape(1, L, L)
    m = jnp.broadcast_to(m, m.shape[:-2] + (L, L))    # expand size-1 query axis if present
    return m.reshape(-1, L, L)                        # (B, L, L)


def prepare_params(params):
    """One-time conversion of torch-layout params into kernel-ready arrays.

    Hoisted out of the per-call path: weights transposed to (in, out), cast to bf16, and
    Q/K/V fused into a single (D, 3D) weight / (1, 3D) bias.
    """
    D = params["wq"].shape[0]
    DFF = params["w1"].shape[0]

    def wt(name):                      # torch (out, in) -> (in, out), bf16 for the MXU
        return params[name].T.astype(jnp.bfloat16)

    def vec(name, n):                  # 1-row f32 vector (bias / gamma / beta)
        return params[name].reshape(1, n).astype(jnp.float32)

    return {
        "wqkv": jnp.concatenate([wt("wq"), wt("wk"), wt("wv")], axis=1),      # (D, 3D)
        "bqkv": jnp.concatenate([params["bq"], params["bk"], params["bv"]]
                                ).reshape(1, 3 * D).astype(jnp.float32),
        "wo": wt("wo"), "bo": vec("bo", D),
        "w1": wt("w1"), "b1": vec("b1", DFF),
        "w2": wt("w2"), "b2": vec("b2", D),
        "ln1_g": vec("ln1_g", D), "ln1_b": vec("ln1_b", D),
        "ln2_g": vec("ln2_g", D), "ln2_b": vec("ln2_b", D),
    }


def transformer_encoder_layer(src, prepped, src_mask=None, src_key_padding_mask=None,
                              *, num_heads):
    """Eval-mode forward of TransformerEncoderLayer (is_r_transformer=False)."""
    B, L, D = src.shape
    H = num_heads
    DEP = D // H

    # TODO(synk): LocalRNNLayer (GRU) branch for is_r_transformer=True is not implemented.
    mask3 = _mask_to_3d(merge_mask(src_mask, src_key_padding_mask), L)
    x2d = src.reshape(B * L, D).astype(jnp.float32)

    kernel = functools.partial(encoder_layer_kernel, B, L, H, DEP)
    out2d = pl.pallas_call(
        kernel,
        out_shape=jax.ShapeDtypeStruct((B * L, D), jnp.float32),
        compiler_params=pltpu.CompilerParams(vmem_limit_bytes=32 * 1024 * 1024),
    )(x2d, mask3,
      prepped["wqkv"], prepped["bqkv"], prepped["wo"], prepped["bo"],
      prepped["w1"], prepped["b1"], prepped["w2"], prepped["b2"],
      prepped["ln1_g"], prepped["ln1_b"], prepped["ln2_g"], prepped["ln2_b"])
    return out2d.reshape(B, L, D)


# ----------------------------------------------------------------------------- reference

def reference_encoder_layer(src, params, src_mask=None, src_key_padding_mask=None,
                            *, num_heads):
    """Plain-JAX float32 replica of the PyTorch forward (eval mode)."""
    B, L, D = src.shape
    H = num_heads
    DEP = D // H

    def lin(x, w, b):                  # torch Linear: x @ W.T + b
        return x @ w.T + b

    def ln(x, g, b, eps=1e-5):
        mu = x.mean(-1, keepdims=True)
        var = ((x - mu) ** 2).mean(-1, keepdims=True)
        return (x - mu) / jnp.sqrt(var + eps) * g + b

    mask = merge_mask(src_mask, src_key_padding_mask)

    def split(t):
        return t.reshape(B, L, H, DEP).transpose(0, 2, 1, 3)

    q = split(lin(src, params["wq"], params["bq"]))
    k = split(lin(src, params["wk"], params["bk"]))
    v = split(lin(src, params["wv"], params["bv"]))
    logits = jnp.einsum("bhqd,bhkd->bhqk", q, k) / math.sqrt(DEP)
    if mask is not None:
        logits = jnp.where(mask == 0, -1e9, logits)
    w = jax.nn.softmax(logits, axis=-1)
    ctx = jnp.einsum("bhqk,bhkd->bhqd", w, v).transpose(0, 2, 1, 3).reshape(B, L, D)
    attn = lin(ctx, params["wo"], params["bo"])

    h = ln(src + attn, params["ln1_g"], params["ln1_b"])
    ff = jnp.maximum(lin(h, params["w1"], params["b1"]), 0.0)
    ff = lin(ff, params["w2"], params["b2"])
    return ln(h + ff, params["ln2_g"], params["ln2_b"])


def init_params(key, d_model, dff):
    """Deterministic torch-style init: Linear U(-1/sqrt(fan_in), 1/sqrt(fan_in)); LayerNorm ones/zeros."""
    specs = {
        "wq": ((d_model, d_model), d_model), "bq": ((d_model,), d_model),
        "wk": ((d_model, d_model), d_model), "bk": ((d_model,), d_model),
        "wv": ((d_model, d_model), d_model), "bv": ((d_model,), d_model),
        "wo": ((d_model, d_model), d_model), "bo": ((d_model,), d_model),
        "w1": ((dff, d_model), d_model),     "b1": ((dff,), d_model),
        "w2": ((d_model, dff), dff),         "b2": ((d_model,), dff),
    }
    keys = jax.random.split(key, len(specs))
    params = {}
    for (name, (shape, fan_in)), kk in zip(specs.items(), keys):
        bound = 1.0 / math.sqrt(fan_in)
        params[name] = jax.random.uniform(kk, shape, jnp.float32, -bound, bound)
    params["ln1_g"] = jnp.ones((d_model,), jnp.float32)
    params["ln1_b"] = jnp.zeros((d_model,), jnp.float32)
    params["ln2_g"] = jnp.ones((d_model,), jnp.float32)
    params["ln2_b"] = jnp.zeros((d_model,), jnp.float32)
    return params


if __name__ == "__main__":
    B, L, D, H, DFF = 2, 8, 32, 4, 64

    key = jax.random.PRNGKey(0)
    k_src, k_par = jax.random.split(key)
    src = jax.random.normal(k_src, (B, L, D), jnp.float32)
    src_mask = jnp.tril(jnp.ones((L, L), jnp.float32))   # causal (memory_len, memory_len)
    params = init_params(k_par, D, DFF)
    prepped = prepare_params(params)                     # weight prep paid once, not per call

    # Case 1: causal mask only.
    out = transformer_encoder_layer(src, prepped, src_mask=src_mask, num_heads=H)
    jax.block_until_ready(out)
    ref = reference_encoder_layer(src, params, src_mask=src_mask, num_heads=H)
    assert out.shape == (B, L, D)
    err = float(jnp.max(jnp.abs(out - ref)))
    # bf16 MXU operands with f32 accumulation -> small (~1e-3) deviation from the f32 reference.
    assert err < 2e-2, f"max abs error {err}"

    # Case 2: causal mask + key padding mask (batch 1 pads key 0 -> query row 0 becomes
    # fully masked, exercising the masked_fill / uniform-softmax path).
    kpm = jnp.zeros((B, L), bool).at[1, 0].set(True).at[1, L - 1].set(True)
    out2 = transformer_encoder_layer(src, prepped, src_mask=src_mask,
                                     src_key_padding_mask=kpm, num_heads=H)
    jax.block_until_ready(out2)
    ref2 = reference_encoder_layer(src, params, src_mask=src_mask,
                                   src_key_padding_mask=kpm, num_heads=H)
    err2 = float(jnp.max(jnp.abs(out2 - ref2)))
    assert err2 < 2e-2, f"max abs error {err2}"

    print("KERNEL_OK")
</pallas_src>

<mosaic_0001>
module attributes {stable_mosaic.version = 11 : i64} {
  func.func @encoder_layer_kernel(%arg0: memref<16x32xf32, #tpu.memory_space<vmem>>, %arg1: memref<1x8x8xf32, #tpu.memory_space<vmem>>, %arg2: memref<32x96xbf16, #tpu.memory_space<vmem>>, %arg3: memref<1x96xf32, #tpu.memory_space<vmem>>, %arg4: memref<32x32xbf16, #tpu.memory_space<vmem>>, %arg5: memref<1x32xf32, #tpu.memory_space<vmem>>, %arg6: memref<32x64xbf16, #tpu.memory_space<vmem>>, %arg7: memref<1x64xf32, #tpu.memory_space<vmem>>, %arg8: memref<64x32xbf16, #tpu.memory_space<vmem>>, %arg9: memref<1x32xf32, #tpu.memory_space<vmem>>, %arg10: memref<1x32xf32, #tpu.memory_space<vmem>>, %arg11: memref<1x32xf32, #tpu.memory_space<vmem>>, %arg12: memref<1x32xf32, #tpu.memory_space<vmem>>, %arg13: memref<1x32xf32, #tpu.memory_space<vmem>>, %arg14: memref<16x32xf32, #tpu.memory_space<vmem>>) attributes {dimension_semantics = [], scalar_prefetch = 0 : i64, scratch_operands = 0 : i64, tpu.core_type = #tpu.core_type<tc>} {
    %c0 = arith.constant 0 : index
    %c0_0 = arith.constant 0 : index
    %0 = vector.load %arg0[%c0, %c0_0] : memref<16x32xf32, #tpu.memory_space<vmem>>, vector<16x32xf32>
    %1 = arith.truncf %0 : vector<16x32xf32> to vector<16x32xbf16>
    %c0_1 = arith.constant 0 : index
    %c0_2 = arith.constant 0 : index
    %2 = vector.load %arg2[%c0_1, %c0_2] : memref<32x96xbf16, #tpu.memory_space<vmem>>, vector<32x96xbf16>
    %cst = arith.constant dense<0.000000e+00> : vector<16x96xf32>
    %3 = tpu.matmul %1, %2, %cst {dimension_numbers = #tpu.dot_dimension_numbers<[1], [0], [0], [1], [0, 0, 1, 1], [], []>} : vector<16x32xbf16>, vector<32x96xbf16>, vector<16x96xf32> -> vector<16x96xf32>
    %c0_3 = arith.constant 0 : index
    %c0_4 = arith.constant 0 : index
    %4 = vector.load %arg3[%c0_3, %c0_4] : memref<1x96xf32, #tpu.memory_space<vmem>>, vector<1x96xf32>
    %5 = vector.broadcast %4 : vector<1x96xf32> to vector<16x96xf32>
    %6 = arith.addf %3, %5 : vector<16x96xf32>
    %7 = arith.truncf %6 : vector<16x96xf32> to vector<16x96xbf16>
    %8 = vector.shape_cast %7 : vector<16x96xbf16> to vector<2x8x96xbf16>
    %9 = vector.extract_strided_slice %8 {offsets = [0, 0, 0], sizes = [2, 8, 8], strides = [1, 1, 1]} : vector<2x8x96xbf16> to vector<2x8x8xbf16>
    %10 = vector.extract_strided_slice %8 {offsets = [0, 0, 8], sizes = [2, 8, 8], strides = [1, 1, 1]} : vector<2x8x96xbf16> to vector<2x8x8xbf16>
    %11 = vector.extract_strided_slice %8 {offsets = [0, 0, 16], sizes = [2, 8, 8], strides = [1, 1, 1]} : vector<2x8x96xbf16> to vector<2x8x8xbf16>
    %12 = vector.extract_strided_slice %8 {offsets = [0, 0, 24], sizes = [2, 8, 8], strides = [1, 1, 1]} : vector<2x8x96xbf16> to vector<2x8x8xbf16>
    %13 = tpu.concatenate %9, %10, %11, %12 in 0 : vector<2x8x8xbf16>, vector<2x8x8xbf16>, vector<2x8x8xbf16>, vector<2x8x8xbf16> -> vector<8x8x8xbf16>
    %14 = vector.extract_strided_slice %8 {offsets = [0, 0, 32], sizes = [2, 8, 8], strides = [1, 1, 1]} : vector<2x8x96xbf16> to vector<2x8x8xbf16>
    %15 = vector.extract_strided_slice %8 {offsets = [0, 0, 40], sizes = [2, 8, 8], strides = [1, 1, 1]} : vector<2x8x96xbf16> to vector<2x8x8xbf16>
    %16 = vector.extract_strided_slice %8 {offsets = [0, 0, 48], sizes = [2, 8, 8], strides = [1, 1, 1]} : vector<2x8x96xbf16> to vector<2x8x8xbf16>
    %17 = vector.extract_strided_slice %8 {offsets = [0, 0, 56], sizes = [2, 8, 8], strides = [1, 1, 1]} : vector<2x8x96xbf16> to vector<2x8x8xbf16>
    %18 = tpu.concatenate %14, %15, %16, %17 in 0 : vector<2x8x8xbf16>, vector<2x8x8xbf16>, vector<2x8x8xbf16>, vector<2x8x8xbf16> -> vector<8x8x8xbf16>
    %19 = vector.extract_strided_slice %8 {offsets = [0, 0, 64], sizes = [2, 8, 8], strides = [1, 1, 1]} : vector<2x8x96xbf16> to vector<2x8x8xbf16>
    %20 = vector.extract_strided_slice %8 {offsets = [0, 0, 72], sizes = [2, 8, 8], strides = [1, 1, 1]} : vector<2x8x96xbf16> to vector<2x8x8xbf16>
    %21 = vector.extract_strided_slice %8 {offsets = [0, 0, 80], sizes = [2, 8, 8], strides = [1, 1, 1]} : vector<2x8x96xbf16> to vector<2x8x8xbf16>
    %22 = vector.extract_strided_slice %8 {offsets = [0, 0, 88], sizes = [2, 8, 8], strides = [1, 1, 1]} : vector<2x8x96xbf16> to vector<2x8x8xbf16>
    %23 = tpu.concatenate %19, %20, %21, %22 in 0 : vector<2x8x8xbf16>, vector<2x8x8xbf16>, vector<2x8x8xbf16>, vector<2x8x8xbf16> -> vector<8x8x8xbf16>
    "tpu.trace_start"() <{level = 10 : i32, message = "nqd,nkd->nqk"}> : () -> ()
    %cst_5 = arith.constant dense<0.000000e+00> : vector<8x8x8xf32>
    %24 = tpu.matmul %13, %18, %cst_5 {dimension_numbers = #tpu.dot_dimension_numbers<[2], [2], [1], [1], [0, 0, 0, 1, 1, 1], [0], [0]>} : vector<8x8x8xbf16>, vector<8x8x8xbf16>, vector<8x8x8xf32> -> vector<8x8x8xf32>
    "tpu.trace_stop"() : () -> ()
    %cst_6 = arith.constant 0.353553385 : f32
    %25 = vector.broadcast %cst_6 : f32 to vector<8x8x8xf32>
    %26 = arith.mulf %24, %25 : vector<8x8x8xf32>
    %c0_7 = arith.constant 0 : index
    %c0_8 = arith.constant 0 : index
    %c0_9 = arith.constant 0 : index
    %27 = vector.load %arg1[%c0_7, %c0_8, %c0_9] : memref<1x8x8xf32, #tpu.memory_space<vmem>>, vector<1x8x8xf32>
    %28 = vector.shape_cast %27 : vector<1x8x8xf32> to vector<1x1x8x8xf32>
    %29 = vector.broadcast %28 : vector<1x1x8x8xf32> to vector<4x2x8x8xf32>
    %30 = vector.shape_cast %29 : vector<4x2x8x8xf32> to vector<8x8x8xf32>
    %cst_10 = arith.constant 0.000000e+00 : f32
    %31 = vector.broadcast %cst_10 : f32 to vector<8x8x8xf32>
    %32 = arith.cmpf oeq, %30, %31 : vector<8x8x8xf32>
    %cst_11 = arith.constant -1.000000e+09 : f32
    %33 = vector.broadcast %cst_11 : f32 to vector<8x8x8xf32>
    %34 = arith.select %32, %33, %26 : vector<8x8x8xi1>, vector<8x8x8xf32>
    %cst_12 = arith.constant dense<0xFF800000> : vector<8x8xf32>
    %35 = vector.multi_reduction <maximumf>, %34, %cst_12 [2] : vector<8x8x8xf32> to vector<8x8xf32>
    %36 = vector.shape_cast %35 : vector<8x8xf32> to vector<8x8x1xf32>
    %37 = vector.broadcast %36 : vector<8x8x1xf32> to vector<8x8x8xf32>
    %38 = arith.subf %34, %37 : vector<8x8x8xf32>
    %39 = math.exp %38 : vector<8x8x8xf32>
    %cst_13 = arith.constant dense<0.000000e+00> : vector<8x8xf32>
    %40 = vector.multi_reduction <add>, %39, %cst_13 [2] : vector<8x8x8xf32> to vector<8x8xf32>
    %41 = vector.shape_cast %40 : vector<8x8xf32> to vector<8x8x1xf32>
    %42 = tpu.reciprocal %41 {approx = true} : vector<8x8x1xf32> -> vector<8x8x1xf32>
    %43 = vector.broadcast %42 : vector<8x8x1xf32> to vector<8x8x8xf32>
    %44 = arith.mulf %39, %43 : vector<8x8x8xf32>
    %45 = arith.truncf %44 : vector<8x8x8xf32> to vector<8x8x8xbf16>
    "tpu.trace_start"() <{level = 10 : i32, message = "nqk,nkd->nqd"}> : () -> ()
    %cst_14 = arith.constant dense<0.000000e+00> : vector<8x8x8xf32>
    %46 = tpu.matmul %45, %23, %cst_14 {dimension_numbers = #tpu.dot_dimension_numbers<[2], [1], [1], [2], [0, 0, 0, 1, 1, 2], [0], [0]>} : vector<8x8x8xbf16>, vector<8x8x8xbf16>, vector<8x8x8xf32> -> vector<8x8x8xf32>
    "tpu.trace_stop"() : () -> ()
    %47 = vector.extract_strided_slice %46 {offsets = [0, 0, 0], sizes = [2, 8, 8], strides = [1, 1, 1]} : vector<8x8x8xf32> to vector<2x8x8xf32>
    %48 = vector.extract_strided_slice %46 {offsets = [2, 0, 0], sizes = [2, 8, 8], strides = [1, 1, 1]} : vector<8x8x8xf32> to vector<2x8x8xf32>
    %49 = vector.extract_strided_slice %46 {offsets = [4, 0, 0], sizes = [2, 8, 8], strides = [1, 1, 1]} : vector<8x8x8xf32> to vector<2x8x8xf32>
    %50 = vector.extract_strided_slice %46 {offsets = [6, 0, 0], sizes = [2, 8, 8], strides = [1, 1, 1]} : vector<8x8x8xf32> to vector<2x8x8xf32>
    %51 = tpu.concatenate %47, %48, %49, %50 in 2 : vector<2x8x8xf32>, vector<2x8x8xf32>, vector<2x8x8xf32>, vector<2x8x8xf32> -> vector<2x8x32xf32>
    %52 = vector.shape_cast %51 : vector<2x8x32xf32> to vector<16x32xf32>
    %53 = arith.truncf %52 : vector<16x32xf32> to vector<16x32xbf16>
    %c0_15 = arith.constant 0 : index
    %c0_16 = arith.constant 0 : index
    %54 = vector.load %arg4[%c0_15, %c0_16] : memref<32x32xbf16, #tpu.memory_space<vmem>>, vector<32x32xbf16>
    %cst_17 = arith.constant dense<0.000000e+00> : vector<16x32xf32>
    %55 = tpu.matmul %53, %54, %cst_17 {dimension_numbers = #tpu.dot_dimension_numbers<[1], [0], [0], [1], [0, 0, 1, 1], [], []>} : vector<16x32xbf16>, vector<32x32xbf16>, vector<16x32xf32> -> vector<16x32xf32>
    %c0_18 = arith.constant 0 : index
    %c0_19 = arith.constant 0 : index
    %56 = vector.load %arg5[%c0_18, %c0_19] : memref<1x32xf32, #tpu.memory_space<vmem>>, vector<1x32xf32>
    %57 = vector.broadcast %56 : vector<1x32xf32> to vector<16x32xf32>
    %58 = arith.addf %55, %57 : vector<16x32xf32>
    %59 = arith.addf %0, %58 : vector<16x32xf32>
    %c0_20 = arith.constant 0 : index
    %c0_21 = arith.constant 0 : index
    %60 = vector.load %arg10[%c0_20, %c0_21] : memref<1x32xf32, #tpu.memory_space<vmem>>, vector<1x32xf32>
    %c0_22 = arith.constant 0 : index
    %c0_23 = arith.constant 0 : index
    %61 = vector.load %arg11[%c0_22, %c0_23] : memref<1x32xf32, #tpu.memory_space<vmem>>, vector<1x32xf32>
    %cst_24 = arith.constant dense<0.000000e+00> : vector<16xf32>
    %62 = vector.multi_reduction <add>, %59, %cst_24 [1] : vector<16x32xf32> to vector<16xf32>
    %63 = vector.shape_cast %62 : vector<16xf32> to vector<16x1xf32>
    %cst_25 = arith.constant 3.200000e+01 : f32
    %64 = vector.broadcast %cst_25 : f32 to vector<16x1xf32>
    %65 = arith.divf %63, %64 : vector<16x1xf32>
    %66 = vector.broadcast %65 : vector<16x1xf32> to vector<16x32xf32>
    %67 = arith.subf %59, %66 : vector<16x32xf32>
    %68 = arith.mulf %67, %67 : vector<16x32xf32>
    %cst_26 = arith.constant dense<0.000000e+00> : vector<16xf32>
    %69 = vector.multi_reduction <add>, %68, %cst_26 [1] : vector<16x32xf32> to vector<16xf32>
    %70 = vector.shape_cast %69 : vector<16xf32> to vector<16x1xf32>
    %cst_27 = arith.constant 3.200000e+01 : f32
    %71 = vector.broadcast %cst_27 : f32 to vector<16x1xf32>
    %72 = arith.divf %70, %71 : vector<16x1xf32>
    %cst_28 = arith.constant 9.99999974E-6 : f32
    %73 = vector.broadcast %cst_28 : f32 to vector<16x1xf32>
    %74 = arith.addf %72, %73 : vector<16x1xf32>
    %75 = math.rsqrt %74 : vector<16x1xf32>
    %76 = vector.broadcast %75 : vector<16x1xf32> to vector<16x32xf32>
    %77 = arith.mulf %67, %76 : vector<16x32xf32>
    %78 = vector.broadcast %60 : vector<1x32xf32> to vector<16x32xf32>
    %79 = arith.mulf %77, %78 : vector<16x32xf32>
    %80 = vector.broadcast %61 : vector<1x32xf32> to vector<16x32xf32>
    %81 = arith.addf %79, %80 : vector<16x32xf32>
    %82 = arith.truncf %81 : vector<16x32xf32> to vector<16x32xbf16>
    %c0_29 = arith.constant 0 : index
    %c0_30 = arith.constant 0 : index
    %83 = vector.load %arg6[%c0_29, %c0_30] : memref<32x64xbf16, #tpu.memory_space<vmem>>, vector<32x64xbf16>
    %cst_31 = arith.constant dense<0.000000e+00> : vector<16x64xf32>
    %84 = tpu.matmul %82, %83, %cst_31 {dimension_numbers = #tpu.dot_dimension_numbers<[1], [0], [0], [1], [0, 0, 1, 1], [], []>} : vector<16x32xbf16>, vector<32x64xbf16>, vector<16x64xf32> -> vector<16x64xf32>
    %c0_32 = arith.constant 0 : index
    %c0_33 = arith.constant 0 : index
    %85 = vector.load %arg7[%c0_32, %c0_33] : memref<1x64xf32, #tpu.memory_space<vmem>>, vector<1x64xf32>
    %86 = vector.broadcast %85 : vector<1x64xf32> to vector<16x64xf32>
    %87 = arith.addf %84, %86 : vector<16x64xf32>
    %cst_34 = arith.constant 0.000000e+00 : f32
    %88 = vector.broadcast %cst_34 : f32 to vector<16x64xf32>
    %89 = arith.maximumf %87, %88 : vector<16x64xf32>
    %90 = arith.truncf %89 : vector<16x64xf32> to vector<16x64xbf16>
    %c0_35 = arith.constant 0 : index
    %c0_36 = arith.constant 0 : index
    %91 = vector.load %arg8[%c0_35, %c0_36] : memref<64x32xbf16, #tpu.memory_space<vmem>>, vector<64x32xbf16>
    %cst_37 = arith.constant dense<0.000000e+00> : vector<16x32xf32>
    %92 = tpu.matmul %90, %91, %cst_37 {dimension_numbers = #tpu.dot_dimension_numbers<[1], [0], [0], [1], [0, 0, 1, 1], [], []>} : vector<16x64xbf16>, vector<64x32xbf16>, vector<16x32xf32> -> vector<16x32xf32>
    %c0_38 = arith.constant 0 : index
    %c0_39 = arith.constant 0 : index
    %93 = vector.load %arg9[%c0_38, %c0_39] : memref<1x32xf32, #tpu.memory_space<vmem>>, vector<1x32xf32>
    %94 = vector.broadcast %93 : vector<1x32xf32> to vector<16x32xf32>
    %95 = arith.addf %92, %94 : vector<16x32xf32>
    %96 = arith.addf %81, %95 : vector<16x32xf32>
    %c0_40 = arith.constant 0 : index
    %c0_41 = arith.constant 0 : index
    %97 = vector.load %arg12[%c0_40, %c0_41] : memref<1x32xf32, #tpu.memory_space<vmem>>, vector<1x32xf32>
    %c0_42 = arith.constant 0 : index
    %c0_43 = arith.constant 0 : index
    %98 = vector.load %arg13[%c0_42, %c0_43] : memref<1x32xf32, #tpu.memory_space<vmem>>, vector<1x32xf32>
    %cst_44 = arith.constant dense<0.000000e+00> : vector<16xf32>
    %99 = vector.multi_reduction <add>, %96, %cst_44 [1] : vector<16x32xf32> to vector<16xf32>
    %100 = vector.shape_cast %99 : vector<16xf32> to vector<16x1xf32>
    %cst_45 = arith.constant 3.200000e+01 : f32
    %101 = vector.broadcast %cst_45 : f32 to vector<16x1xf32>
    %102 = arith.divf %100, %101 : vector<16x1xf32>
    %103 = vector.broadcast %102 : vector<16x1xf32> to vector<16x32xf32>
    %104 = arith.subf %96, %103 : vector<16x32xf32>
    %105 = arith.mulf %104, %104 : vector<16x32xf32>
    %cst_46 = arith.constant dense<0.000000e+00> : vector<16xf32>
    %106 = vector.multi_reduction <add>, %105, %cst_46 [1] : vector<16x32xf32> to vector<16xf32>
    %107 = vector.shape_cast %106 : vector<16xf32> to vector<16x1xf32>
    %cst_47 = arith.constant 3.200000e+01 : f32
    %108 = vector.broadcast %cst_47 : f32 to vector<16x1xf32>
    %109 = arith.divf %107, %108 : vector<16x1xf32>
    %cst_48 = arith.constant 9.99999974E-6 : f32
    %110 = vector.broadcast %cst_48 : f32 to vector<16x1xf32>
    %111 = arith.addf %109, %110 : vector<16x1xf32>
    %112 = math.rsqrt %111 : vector<16x1xf32>
    %113 = vector.broadcast %112 : vector<16x1xf32> to vector<16x32xf32>
    %114 = arith.mulf %104, %113 : vector<16x32xf32>
    %115 = vector.broadcast %97 : vector<1x32xf32> to vector<16x32xf32>
    %116 = arith.mulf %114, %115 : vector<16x32xf32>
    %117 = vector.broadcast %98 : vector<1x32xf32> to vector<16x32xf32>
    %118 = arith.addf %116, %117 : vector<16x32xf32>
    %c0_49 = arith.constant 0 : index
    %c0_50 = arith.constant 0 : index
    %119 = vector.load %arg14[%c0_49, %c0_50] : memref<16x32xf32, #tpu.memory_space<vmem>>, vector<16x32xf32>
    tpu.vector_store %arg14[%c0_49, %c0_50], %118 {strides = array<i32>} : memref<16x32xf32, #tpu.memory_space<vmem>>, vector<16x32xf32>,
    return
  }
}

</mosaic_0001>

<llo_original>
// kernel: tpu_custom_call.1
$region0: #{tpu_custom_call.1}
  #allocation0 [shape = 'u32[]', space=smem, size = 0x4, offset = 0x4, fixed_abs, tag = 'smem constant byte address 0x4 - core index']
  #allocation1 [shape = 'u32[144,128]{1,0:T(1,128)}', space=vmem, size = 0x12000, scoped, tag = 'internal scratch']
  %s0 = inlined_call_operand.vmem [shape: f32[16,32], index: 0, kind: input, shape index: {}]
  %s1 = inlined_call_operand.hbm [shape: f32[1,8,8], index: 1, kind: input, shape index: {}]
  %s2 = inlined_call_operand.vmem [shape: bf16[32,96], index: 2, kind: input, shape index: {}]
  %s3 = inlined_call_operand.vmem [shape: f32[1,96], index: 3, kind: input, shape index: {}]
  %s4 = inlined_call_operand.vmem [shape: bf16[32,32], index: 4, kind: input, shape index: {}]
  %s5 = inlined_call_operand.vmem [shape: f32[1,32], index: 5, kind: input, shape index: {}]
  %s6 = inlined_call_operand.hbm [shape: bf16[32,64], index: 6, kind: input, shape index: {}]
  %s7 = inlined_call_operand.vmem [shape: f32[1,64], index: 7, kind: input, shape index: {}]
  %s8 = inlined_call_operand.vmem [shape: bf16[64,32], index: 8, kind: input, shape index: {}]
  %s9 = inlined_call_operand.vmem [shape: f32[1,32], index: 9, kind: input, shape index: {}]
  %s10 = inlined_call_operand.vmem [shape: f32[1,32], index: 10, kind: input, shape index: {}]
  %s11 = inlined_call_operand.vmem [shape: f32[1,32], index: 11, kind: input, shape index: {}]
  %s12 = inlined_call_operand.vmem [shape: f32[1,32], index: 12, kind: input, shape index: {}]
  %s13 = inlined_call_operand.vmem [shape: f32[1,32], index: 13, kind: input, shape index: {}]
  %s14 = inlined_call_operand.hbm [shape: f32[16,32], index: 14, kind: output, shape index: {}]
  %s15 = sld [smem:[#allocation0]]
  $region74: #{tpu_custom_call.1} parent=0
    _
  %s17 = ssub.s32 1, %s15
  %s18 = scalar_select 0, %s17, %s15
  $region1: #{tpu_custom_call.1} parent=0
    #allocation2 [shape = 'u8[4096]{0}', space=vmem, size = 0x1000, scoped, tag = 'input window, operand 1, single buffered']
    #allocation3 [shape = 's32[1]{0}', space=sflag, size = 0x4, scoped, tag = 'scoped memory for tpu_custom_call.1']
    #allocation4 [shape = 's32[1]{0}', space=sflag, size = 0x4, scoped, tag = 'scoped memory for tpu_custom_call.1']
    #allocation5 [shape = 'u8[8192]{0}', space=vmem, size = 0x2000, scoped, tag = 'input window, operand 6, single buffered']
    #allocation6 [shape = 's32[1]{0}', space=sflag, size = 0x4, scoped, tag = 'scoped memory for tpu_custom_call.1']
    #allocation7 [shape = 'u8[8192]{0}', space=vmem, size = 0x2000, scoped, tag = 'output window, operand 0, single buffered']
    %19 = vsyncpa [#allocation3], 0
    %20 = vsyncpa [#allocation6], 0
    %21 = vsyncpa [#allocation4], 0
    // Predicated region
    $region2: #{tpu_custom_call.1} parent=1 // pred_check
      _
    $region3: #{tpu_custom_call.1} parent=1 // pred_check_branch
      %23 = sbr.rel (0) target = $region5
    $region4: #{tpu_custom_call.1} parent=1 // pred_region
      _
    $region5: #{tpu_custom_call.1} parent=1 // pred_fallthru
      _
    // Predicated region
    $region6: #{tpu_custom_call.1} parent=1 // pred_check
      _
    $region7: #{tpu_custom_call.1} parent=1 // pred_check_branch
      %25 = sbr.rel (0) target = $region9
    $region8: #{tpu_custom_call.1} parent=1 // pred_region
      %s27 = ssub.s32 128, 128
      %28 = vsyncadd [#allocation3], %s27
      %s30 = sshll.u32 [#allocation2], 4
      %s31 = int_to_ptr.vmem [resolvable:$true] %s30
      %33 = dma.hbm_to_vmem [thread:$0]  %s1, 128, %s31, [#allocation3]
    $region9: #{tpu_custom_call.1} parent=1 // pred_fallthru
      _
    // Predicated region
    $region10: #{tpu_custom_call.1} parent=1 // pred_check
      _
    $region11: #{tpu_custom_call.1} parent=1 // pred_check_branch
      %35 = sbr.rel (0) target = $region13
    $region12: #{tpu_custom_call.1} parent=1 // pred_region
      _
    $region13: #{tpu_custom_call.1} parent=1 // pred_fallthru
      _
    // Predicated region
    $region14: #{tpu_custom_call.1} parent=1 // pred_check
      _
    $region15: #{tpu_custom_call.1} parent=1 // pred_check_branch
      %37 = sbr.rel (0) target = $region17
    $region16: #{tpu_custom_call.1} parent=1 // pred_region
      _
    $region17: #{tpu_custom_call.1} parent=1 // pred_fallthru
      _
    // Predicated region
    $region18: #{tpu_custom_call.1} parent=1 // pred_check
      _
    $region19: #{tpu_custom_call.1} parent=1 // pred_check_branch
      %39 = sbr.rel (0) target = $region21
    $region20: #{tpu_custom_call.1} parent=1 // pred_region
      _
    $region21: #{tpu_custom_call.1} parent=1 // pred_fallthru
      _
    // Predicated region
    $region22: #{tpu_custom_call.1} parent=1 // pred_check
      _
    $region23: #{tpu_custom_call.1} parent=1 // pred_check_branch
      %41 = sbr.rel (0) target = $region25
    $region24: #{tpu_custom_call.1} parent=1 // pred_region
      _
    $region25: #{tpu_custom_call.1} parent=1 // pred_fallthru
      _
    // Predicated region
    $region26: #{tpu_custom_call.1} parent=1 // pred_check
      _
    $region27: #{tpu_custom_call.1} parent=1 // pred_check_branch
      %43 = sbr.rel (0) target = $region29
    $region28: #{tpu_custom_call.1} parent=1 // pred_region
      %s45 = ssub.s32 256, 256
      %46 = vsyncadd [#allocation6], %s45
      %s47 = sshll.u32 [#allocation5], 4
      %s48 = int_to_ptr.vmem [resolvable:$true] %s47
      %53 = dma.hbm_to_vmem [thread:$0]  %s6, 256, %s48, [#allocation6], 64, 64, 4
    $region29: #{tpu_custom_call.1} parent=1 // pred_fallthru
      _
    // Predicated region
    $region30: #{tpu_custom_call.1} parent=1 // pred_check
      _
    $region31: #{tpu_custom_call.1} parent=1 // pred_check_branch
      %55 = sbr.rel (0) target = $region33
    $region32: #{tpu_custom_call.1} parent=1 // pred_region
      _
    $region33: #{tpu_custom_call.1} parent=1 // pred_fallthru
      _
    // Predicated region
    $region34: #{tpu_custom_call.1} parent=1 // pred_check
      _
    $region35: #{tpu_custom_call.1} parent=1 // pred_check_branch
      %57 = sbr.rel (0) target = $region37
    $region36: #{tpu_custom_call.1} parent=1 // pred_region
      _
    $region37: #{tpu_custom_call.1} parent=1 // pred_fallthru
      _
    // Predicated region
    $region38: #{tpu_custom_call.1} parent=1 // pred_check
      _
    $region39: #{tpu_custom_call.1} parent=1 // pred_check_branch
      %59 = sbr.rel (0) target = $region41
    $region40: #{tpu_custom_call.1} parent=1 // pred_region
      _
    $region41: #{tpu_custom_call.1} parent=1 // pred_fallthru
      _
    // Predicated region
    $region42: #{tpu_custom_call.1} parent=1 // pred_check
      _
    $region43: #{tpu_custom_call.1} parent=1 // pred_check_branch
      %61 = sbr.rel (0) target = $region45
    $region44: #{tpu_custom_call.1} parent=1 // pred_region
      _
    $region45: #{tpu_custom_call.1} parent=1 // pred_fallthru
      _
    // Predicated region
    $region46: #{tpu_custom_call.1} parent=1 // pred_check
      _
    $region47: #{tpu_custom_call.1} parent=1 // pred_check_branch
      %63 = sbr.rel (0) target = $region49
    $region48: #{tpu_custom_call.1} parent=1 // pred_region
      _
    $region49: #{tpu_custom_call.1} parent=1 // pred_fallthru
      _
    // Predicated region
    $region50: #{tpu_custom_call.1} parent=1 // pred_check
      _
    $region51: #{tpu_custom_call.1} parent=1 // pred_check_branch
      %65 = sbr.rel (0) target = $region53
    $region52: #{tpu_custom_call.1} parent=1 // pred_region
      _
    $region53: #{tpu_custom_call.1} parent=1 // pred_fallthru
      _
    // Predicated region
    $region54: #{tpu_custom_call.1} parent=1 // pred_check
      _
    $region55: #{tpu_custom_call.1} parent=1 // pred_check_branch
      %67 = sbr.rel (0) target = $region57
    $region56: #{tpu_custom_call.1} parent=1 // pred_region
      _
    $region57: #{tpu_custom_call.1} parent=1 // pred_fallthru
      _
    // Predicated region
    $region58: #{tpu_custom_call.1} parent=1 // pred_check
      _
    $region59: #{tpu_custom_call.1} parent=1 // pred_check_branch
      %69 = sbr.rel (0) target = $region61
    $region60: #{tpu_custom_call.1} parent=1 // pred_region
      %70 = dma.done [#allocation3], 128
    $region61: #{tpu_custom_call.1} parent=1 // pred_fallthru
      _
    // Predicated region
    $region62: #{tpu_custom_call.1} parent=1 // pred_check
      _
    $region63: #{tpu_custom_call.1} parent=1 // pred_check_branch
      %72 = sbr.rel (0) target = $region65
    $region64: #{tpu_custom_call.1} parent=1 // pred_region
      %73 = dma.done [#allocation6], 256
    $region65: #{tpu_custom_call.1} parent=1 // pred_fallthru
      _
    %v75 = vld [vmem:[%s0] sm:$0xff]
    %v76 = vld [vmem:[%s0 + $0x8] sm:$0xff]
    %v77 = vpack.c.bf16 %v76, %v75
    %v78 = vld [vmem:[%s2] sm:$0xf]
    %v79 = vld [vmem:[%s2 + $0x4] sm:$0xf]
    %v80 = vld [vmem:[%s2 + $0x8] sm:$0xf]
    %v81 = vld [vmem:[%s2 + $0xc] sm:$0xf]
    %v82 = vld [vmem:[%s3] sm:$0x1]
    %v84 = vlaneseq
    %v85 = vshrl.u32 %v84, 7
    %v86 = vsub.s32 0, %v85
    %v87 = vrot.slane %v82, %v86
    %v93 = vunpack.c.l.b16 %v78
    %v94 = vunpack.c.l.b16 %v79
    %v95 = vunpack.c.l.b16 %v80
    %v96 = vunpack.c.l.b16 %v81
    %v97 = vpack.c.b16 %v94, %v93
    %v98 = vpack.c.b16 %v96, %v95
    %vm101 = vcmask 261120
    %v103 = vsel %vm101, %v77, 0
    %105 = vmatprep.subr.bf16.mxu0 0
    %106 = vmatpush1.bf16.msra.mxu0 %v97
    %107 = vmatprep.subr.bf16.mxu0 0
    %108 = vmatpush1.bf16.msra.mxu0 %v98
    %109 = vmatprep.subr.bf16.mxu0 0
    %110 = vmatpush1.bf16.msra.mxu0 0
    %111 = vmatprep.subr.bf16.mxu0 0
    %112 = vmatpush1.bf16.msra.mxu0 0
    %113 = vmatprep.subr.bf16.mxu0 0
    %114 = vmatpush1.bf16.msra.mxu0 0
    %115 = vmatprep.subr.bf16.mxu0 0
    %116 = vmatpush1.bf16.msra.mxu0 0
    %117 = vmatprep.subr.bf16.mxu0 0
    %118 = vmatpush1.bf16.msra.mxu0 0
    %119 = vmatprep.subr.bf16.mxu0 0
    %120 = vmatpush1.bf16.msra.mxu0 0
    %121 = vmatprep.subr.bf16.mxu0 0
    %122 = vmatpush1.bf16.msra.mxu0 0
    %123 = vmatprep.subr.bf16.mxu0 0
    %124 = vmatpush1.bf16.msra.mxu0 0
    %125 = vmatprep.subr.bf16.mxu0 0
    %126 = vmatpush1.bf16.msra.mxu0 0
    %127 = vmatprep.subr.bf16.mxu0 0
    %128 = vmatpush1.bf16.msra.mxu0 0
    %129 = vmatprep.subr.bf16.mxu0 0
    %130 = vmatpush1.bf16.msra.mxu0 0
    %131 = vmatprep.subr.bf16.mxu0 0
    %132 = vmatpush1.bf16.msra.mxu0 0
    %133 = vmatprep.subr.bf16.mxu0 0
    %134 = vmatpush1.bf16.msra.mxu0 0
    %135 = vmatprep.subr.bf16.mxu0 0
    %136 = vmatpush1.bf16.msra.mxu0 0
    %137 = vmatprep.mubr.bf16.mxu0 0
    %138 = vmatmul.mubr.bf16.gmra.mrb[0].mxu0 %v103
    %v139 = vpop.f32.mrb[0].mxu0
    %v140 = vadd.f32 %v87, %v139
    %v141 = vpop.f32.mrb[0].mxu0
    %v142 = vpop.f32.mrb[0].mxu0
    %v143 = vadd.f32 %v87, %v142
    %v144 = vpop.f32.mrb[0].mxu0
    %145 = vdwg.mxu0
    %v146 = vpack.c.bf16 %v143, %v140
    %v148 = vunpack.c.l.b16 %v146
    %v149 = vunpack.c.h.b16 %v146
    %v150 = vpack.c.b16 %v148, %v148
    %v151 = vpack.c.b16 %v149, %v149
    %152 = vrot.lane.b32.xlu0 %v150, 120
    %v153 = vpop.permute.xlu0 %152
    %154 = vrot.lane.b32.xlu0 %v151, 120
    %v155 = vpop.permute.xlu0 %154
    %156 = vrot.lane.b32.xlu0 %v150, 112
    %v157 = vpop.permute.xlu0 %156
    %158 = vrot.lane.b32.xlu0 %v151, 112
    %v159 = vpop.permute.xlu0 %158
    %160 = vrot.lane.b32.xlu0 %v150, 104
    %v161 = vpop.permute.xlu0 %160
    %162 = vrot.lane.b32.xlu0 %v151, 104
    %v163 = vpop.permute.xlu0 %162
    %164 = vrot.lane.b32.xlu0 %v150, 96
    %v165 = vpop.permute.xlu0 %164
    %vm166 = vcmask 64512
    %v168 = vsel %vm166, %v150, 0
    %v171 = vsel %vm166, %v165, 0
    %173 = vmatprep.subr.bf16.mxu0 0
    %174 = vmatpush1.bf16.xpose.msra.mxu0 %v171
    %175 = vmatprep.subr.bf16.mxu0 0
    %176 = vmatpush1.bf16.xpose.msra.mxu0 0
    %177 = vmatprep.subr.bf16.mxu0 0
    %178 = vmatpush1.bf16.xpose.msra.mxu0 0
    %179 = vmatprep.subr.bf16.mxu0 0
    %180 = vmatpush1.bf16.xpose.msra.mxu0 0
    %181 = vmatprep.subr.bf16.mxu0 0
    %182 = vmatpush1.bf16.xpose.msra.mxu0 0
    %183 = vmatprep.subr.bf16.mxu0 0
    %184 = vmatpush1.bf16.xpose.msra.mxu0 0
    %185 = vmatprep.subr.bf16.mxu0 0
    %186 = vmatpush1.bf16.xpose.msra.mxu0 0
    %187 = vmatprep.subr.bf16.mxu0 0
    %188 = vmatpush1.bf16.xpose.msra.mxu0 0
    %189 = vmatprep.subr.bf16.mxu0 0
    %190 = vmatpush1.bf16.xpose.msra.mxu0 0
    %191 = vmatprep.subr.bf16.mxu0 0
    %192 = vmatpush1.bf16.xpose.msra.mxu0 0
    %193 = vmatprep.subr.bf16.mxu0 0
    %194 = vmatpush1.bf16.xpose.msra.mxu0 0
    %195 = vmatprep.subr.bf16.mxu0 0
    %196 = vmatpush1.bf16.xpose.msra.mxu0 0
    %197 = vmatprep.subr.bf16.mxu0 0
    %198 = vmatpush1.bf16.xpose.msra.mxu0 0
    %199 = vmatprep.subr.bf16.mxu0 0
    %200 = vmatpush1.bf16.xpose.msra.mxu0 0
    %201 = vmatprep.subr.bf16.mxu0 0
    %202 = vmatpush1.bf16.xpose.msra.mxu0 0
    %203 = vmatprep.subr.bf16.mxu0 0
    %204 = vmatpush1.bf16.xpose.msra.mxu0 0
    %205 = vmatprep.mubr.bf16.mxu0 0
    %206 = vmatmul.mubr.bf16.gmra.mrb[0].mxu0 %v168
    %v207 = vpop.f32.mrb[0].mxu0
    %v208 = vadd.f32 0.0, %v207
    %v209 = vpop.f32.mrb[0].mxu0
    %v210 = vpop.f32.mrb[0].mxu0
    %v211 = vpop.f32.mrb[0].mxu0
    %212 = vdwg.mxu0
    %213 = vrot.lane.b32.xlu0 %v151, 96
    %v214 = vpop.permute.xlu0 %213
    %v216 = vsel %vm166, %v151, 0
    %v219 = vsel %vm166, %v214, 0
    %221 = vmatprep.subr.bf16.mxu0 0
    %222 = vmatpush1.bf16.xpose.msra.mxu0 %v219
    %223 = vmatprep.subr.bf16.mxu0 0
    %224 = vmatpush1.bf16.xpose.msra.mxu0 0
    %225 = vmatprep.subr.bf16.mxu0 0
    %226 = vmatpush1.bf16.xpose.msra.mxu0 0
    %227 = vmatprep.subr.bf16.mxu0 0
    %228 = vmatpush1.bf16.xpose.msra.mxu0 0
    %229 = vmatprep.subr.bf16.mxu0 0
    %230 = vmatpush1.bf16.xpose.msra.mxu0 0
    %231 = vmatprep.subr.bf16.mxu0 0
    %232 = vmatpush1.bf16.xpose.msra.mxu0 0
    %233 = vmatprep.subr.bf16.mxu0 0
    %234 = vmatpush1.bf16.xpose.msra.mxu0 0
    %235 = vmatprep.subr.bf16.mxu0 0
    %236 = vmatpush1.bf16.xpose.msra.mxu0 0
    %237 = vmatprep.subr.bf16.mxu0 0
    %238 = vmatpush1.bf16.xpose.msra.mxu0 0
    %239 = vmatprep.subr.bf16.mxu0 0
    %240 = vmatpush1.bf16.xpose.msra.mxu0 0
    %241 = vmatprep.subr.bf16.mxu0 0
    %242 = vmatpush1.bf16.xpose.msra.mxu0 0
    %243 = vmatprep.subr.bf16.mxu0 0
    %244 = vmatpush1.bf16.xpose.msra.mxu0 0
    %245 = vmatprep.subr.bf16.mxu0 0
    %246 = vmatpush1.bf16.xpose.msra.mxu0 0
    %247 = vmatprep.subr.bf16.mxu0 0
    %248 = vmatpush1.bf16.xpose.msra.mxu0 0
    %249 = vmatprep.subr.bf16.mxu0 0
    %250 = vmatpush1.bf16.xpose.msra.mxu0 0
    %251 = vmatprep.subr.bf16.mxu0 0
    %252 = vmatpush1.bf16.xpose.msra.mxu0 0
    %253 = vmatprep.mubr.bf16.mxu0 0
    %254 = vmatmul.mubr.bf16.gmra.mrb[0].mxu0 %v216
    %v255 = vpop.f32.mrb[0].mxu0
    %v256 = vadd.f32 0.0, %v255
    %v257 = vpop.f32.mrb[0].mxu0
    %v258 = vpop.f32.mrb[0].mxu0
    %v259 = vpop.f32.mrb[0].mxu0
    %260 = vdwg.mxu0
    %v261 = vunpack.c.l.b16 %v153
    %v262 = vpack.c.b16 %v261, %v261
    %263 = vrot.lane.b32.xlu0 %v262, 96
    %v264 = vpop.permute.xlu0 %263
    %v266 = vsel %vm166, %v153, 0
    %v269 = vsel %vm166, %v264, 0
    %271 = vmatprep.subr.bf16.mxu0 0
    %272 = vmatpush1.bf16.xpose.msra.mxu0 %v269
    %273 = vmatprep.subr.bf16.mxu0 0
    %274 = vmatpush1.bf16.xpose.msra.mxu0 0
    %275 = vmatprep.subr.bf16.mxu0 0
    %276 = vmatpush1.bf16.xpose.msra.mxu0 0
    %277 = vmatprep.subr.bf16.mxu0 0
    %278 = vmatpush1.bf16.xpose.msra.mxu0 0
    %279 = vmatprep.subr.bf16.mxu0 0
    %280 = vmatpush1.bf16.xpose.msra.mxu0 0
    %281 = vmatprep.subr.bf16.mxu0 0
    %282 = vmatpush1.bf16.xpose.msra.mxu0 0
    %283 = vmatprep.subr.bf16.mxu0 0
    %284 = vmatpush1.bf16.xpose.msra.mxu0 0
    %285 = vmatprep.subr.bf16.mxu0 0
    %286 = vmatpush1.bf16.xpose.msra.mxu0 0
    %287 = vmatprep.subr.bf16.mxu0 0
    %288 = vmatpush1.bf16.xpose.msra.mxu0 0
    %289 = vmatprep.subr.bf16.mxu0 0
    %290 = vmatpush1.bf16.xpose.msra.mxu0 0
    %291 = vmatprep.subr.bf16.mxu0 0
    %292 = vmatpush1.bf16.xpose.msra.mxu0 0
    %293 = vmatprep.subr.bf16.mxu0 0
    %294 = vmatpush1.bf16.xpose.msra.mxu0 0
    %295 = vmatprep.subr.bf16.mxu0 0
    %296 = vmatpush1.bf16.xpose.msra.mxu0 0
    %297 = vmatprep.subr.bf16.mxu0 0
    %298 = vmatpush1.bf16.xpose.msra.mxu0 0
    %299 = vmatprep.subr.bf16.mxu0 0
    %300 = vmatpush1.bf16.xpose.msra.mxu0 0
    %301 = vmatprep.subr.bf16.mxu0 0
    %302 = vmatpush1.bf16.xpose.msra.mxu0 0
    %303 = vmatprep.mubr.bf16.mxu0 0
    %304 = vmatmul.mubr.bf16.gmra.mrb[0].mxu0 %v266
    %v305 = vpop.f32.mrb[0].mxu0
    %v306 = vadd.f32 0.0, %v305
    %v307 = vpop.f32.mrb[0].mxu0
    %v308 = vpop.f32.mrb[0].mxu0
    %v309 = vpop.f32.mrb[0].mxu0
    %310 = vdwg.mxu0
    %v311 = vunpack.c.l.b16 %v155
    %v312 = vpack.c.b16 %v311, %v311
    %313 = vrot.lane.b32.xlu0 %v312, 96
    %v314 = vpop.permute.xlu0 %313
    %v316 = vsel %vm166, %v155, 0
    %v319 = vsel %vm166, %v314, 0
    %321 = vmatprep.subr.bf16.mxu0 0
    %322 = vmatpush1.bf16.xpose.msra.mxu0 %v319
    %323 = vmatprep.subr.bf16.mxu0 0
    %324 = vmatpush1.bf16.xpose.msra.mxu0 0
    %325 = vmatprep.subr.bf16.mxu0 0
    %326 = vmatpush1.bf16.xpose.msra.mxu0 0
    %327 = vmatprep.subr.bf16.mxu0 0
    %328 = vmatpush1.bf16.xpose.msra.mxu0 0
    %329 = vmatprep.subr.bf16.mxu0 0
    %330 = vmatpush1.bf16.xpose.msra.mxu0 0
    %331 = vmatprep.subr.bf16.mxu0 0
    %332 = vmatpush1.bf16.xpose.msra.mxu0 0
    %333 = vmatprep.subr.bf16.mxu0 0
    %334 = vmatpush1.bf16.xpose.msra.mxu0 0
    %335 = vmatprep.subr.bf16.mxu0 0
    %336 = vmatpush1.bf16.xpose.msra.mxu0 0
    %337 = vmatprep.subr.bf16.mxu0 0
    %338 = vmatpush1.bf16.xpose.msra.mxu0 0
    %339 = vmatprep.subr.bf16.mxu0 0
    %340 = vmatpush1.bf16.xpose.msra.mxu0 0
    %341 = vmatprep.subr.bf16.mxu0 0
    %342 = vmatpush1.bf16.xpose.msra.mxu0 0
    %343 = vmatprep.subr.bf16.mxu0 0
    %344 = vmatpush1.bf16.xpose.msra.mxu0 0
    %345 = vmatprep.subr.bf16.mxu0 0
    %346 = vmatpush1.bf16.xpose.msra.mxu0 0
    %347 = vmatprep.subr.bf16.mxu0 0
    %348 = vmatpush1.bf16.xpose.msra.mxu0 0
    %349 = vmatprep.subr.bf16.mxu0 0
    %350 = vmatpush1.bf16.xpose.msra.mxu0 0
    %351 = vmatprep.subr.bf16.mxu0 0
    %352 = vmatpush1.bf16.xpose.msra.mxu0 0
    %353 = vmatprep.mubr.bf16.mxu0 0
    %354 = vmatmul.mubr.bf16.gmra.mrb[0].mxu0 %v316
    %v355 = vpop.f32.mrb[0].mxu0
    %v356 = vadd.f32 0.0, %v355
    %v357 = vpop.f32.mrb[0].mxu0
    %v358 = vpop.f32.mrb[0].mxu0
    %v359 = vpop.f32.mrb[0].mxu0
    %360 = vdwg.mxu0
    %v361 = vunpack.c.l.b16 %v157
    %v362 = vpack.c.b16 %v361, %v361
    %363 = vrot.lane.b32.xlu0 %v362, 96
    %v364 = vpop.permute.xlu0 %363
    %v366 = vsel %vm166, %v157, 0
    %v369 = vsel %vm166, %v364, 0
    %371 = vmatprep.subr.bf16.mxu0 0
    %372 = vmatpush1.bf16.xpose.msra.mxu0 %v369
    %373 = vmatprep.subr.bf16.mxu0 0
    %374 = vmatpush1.bf16.xpose.msra.mxu0 0
    %375 = vmatprep.subr.bf16.mxu0 0
    %376 = vmatpush1.bf16.xpose.msra.mxu0 0
    %377 = vmatprep.subr.bf16.mxu0 0
    %378 = vmatpush1.bf16.xpose.msra.mxu0 0
    %379 = vmatprep.subr.bf16.mxu0 0
    %380 = vmatpush1.bf16.xpose.msra.mxu0 0
    %381 = vmatprep.subr.bf16.mxu0 0
    %382 = vmatpush1.bf16.xpose.msra.mxu0 0
    %383 = vmatprep.subr.bf16.mxu0 0
    %384 = vmatpush1.bf16.xpose.msra.mxu0 0
    %385 = vmatprep.subr.bf16.mxu0 0
    %386 = vmatpush1.bf16.xpose.msra.mxu0 0
    %387 = vmatprep.subr.bf16.mxu0 0
    %388 = vmatpush1.bf16.xpose.msra.mxu0 0
    %389 = vmatprep.subr.bf16.mxu0 0
    %390 = vmatpush1.bf16.xpose.msra.mxu0 0
    %391 = vmatprep.subr.bf16.mxu0 0
    %392 = vmatpush1.bf16.xpose.msra.mxu0 0
    %393 = vmatprep.subr.bf16.mxu0 0
    %394 = vmatpush1.bf16.xpose.msra.mxu0 0
    %395 = vmatprep.subr.bf16.mxu0 0
    %396 = vmatpush1.bf16.xpose.msra.mxu0 0
    %397 = vmatprep.subr.bf16.mxu0 0
    %398 = vmatpush1.bf16.xpose.msra.mxu0 0
    %399 = vmatprep.subr.bf16.mxu0 0
    %400 = vmatpush1.bf16.xpose.msra.mxu0 0
    %401 = vmatprep.subr.bf16.mxu0 0
    %402 = vmatpush1.bf16.xpose.msra.mxu0 0
    %403 = vmatprep.mubr.bf16.mxu0 0
    %404 = vmatmul.mubr.bf16.gmra.mrb[0].mxu0 %v366
    %v405 = vpop.f32.mrb[0].mxu0
    %v406 = vadd.f32 0.0, %v405
    %v407 = vpop.f32.mrb[0].mxu0
    %v408 = vpop.f32.mrb[0].mxu0
    %v409 = vpop.f32.mrb[0].mxu0
    %410 = vdwg.mxu0
    %v411 = vunpack.c.l.b16 %v159
    %v412 = vpack.c.b16 %v411, %v411
    %413 = vrot.lane.b32.xlu0 %v412, 96
    %v414 = vpop.permute.xlu0 %413
    %v416 = vsel %vm166, %v159, 0
    %v419 = vsel %vm166, %v414, 0
    %421 = vmatprep.subr.bf16.mxu0 0
    %422 = vmatpush1.bf16.xpose.msra.mxu0 %v419
    %423 = vmatprep.subr.bf16.mxu0 0
    %424 = vmatpush1.bf16.xpose.msra.mxu0 0
    %425 = vmatprep.subr.bf16.mxu0 0
    %426 = vmatpush1.bf16.xpose.msra.mxu0 0
    %427 = vmatprep.subr.bf16.mxu0 0
    %428 = vmatpush1.bf16.xpose.msra.mxu0 0
    %429 = vmatprep.subr.bf16.mxu0 0
    %430 = vmatpush1.bf16.xpose.msra.mxu0 0
    %431 = vmatprep.subr.bf16.mxu0 0
    %432 = vmatpush1.bf16.xpose.msra.mxu0 0
    %433 = vmatprep.subr.bf16.mxu0 0
    %434 = vmatpush1.bf16.xpose.msra.mxu0 0
    %435 = vmatprep.subr.bf16.mxu0 0
    %436 = vmatpush1.bf16.xpose.msra.mxu0 0
    %437 = vmatprep.subr.bf16.mxu0 0
    %438 = vmatpush1.bf16.xpose.msra.mxu0 0
    %439 = vmatprep.subr.bf16.mxu0 0
    %440 = vmatpush1.bf16.xpose.msra.mxu0 0
    %441 = vmatprep.subr.bf16.mxu0 0
    %442 = vmatpush1.bf16.xpose.msra.mxu0 0
    %443 = vmatprep.subr.bf16.mxu0 0
    %444 = vmatpush1.bf16.xpose.msra.mxu0 0
    %445 = vmatprep.subr.bf16.mxu0 0
    %446 = vmatpush1.bf16.xpose.msra.mxu0 0
    %447 = vmatprep.subr.bf16.mxu0 0
    %448 = vmatpush1.bf16.xpose.msra.mxu0 0
    %449 = vmatprep.subr.bf16.mxu0 0
    %450 = vmatpush1.bf16.xpose.msra.mxu0 0
    %451 = vmatprep.subr.bf16.mxu0 0
    %452 = vmatpush1.bf16.xpose.msra.mxu0 0
    %453 = vmatprep.mubr.bf16.mxu0 0
    %454 = vmatmul.mubr.bf16.gmra.mrb[0].mxu0 %v416
    %v455 = vpop.f32.mrb[0].mxu0
    %v456 = vadd.f32 0.0, %v455
    %v457 = vpop.f32.mrb[0].mxu0
    %v458 = vpop.f32.mrb[0].mxu0
    %v459 = vpop.f32.mrb[0].mxu0
    %460 = vdwg.mxu0
    %v461 = vunpack.c.l.b16 %v161
    %v462 = vpack.c.b16 %v461, %v461
    %463 = vrot.lane.b32.xlu0 %v462, 96
    %v464 = vpop.permute.xlu0 %463
    %v466 = vsel %vm166, %v161, 0
    %v469 = vsel %vm166, %v464, 0
    %471 = vmatprep.subr.bf16.mxu0 0
    %472 = vmatpush1.bf16.xpose.msra.mxu0 %v469
    %473 = vmatprep.subr.bf16.mxu0 0
    %474 = vmatpush1.bf16.xpose.msra.mxu0 0
    %475 = vmatprep.subr.bf16.mxu0 0
    %476 = vmatpush1.bf16.xpose.msra.mxu0 0
    %477 = vmatprep.subr.bf16.mxu0 0
    %478 = vmatpush1.bf16.xpose.msra.mxu0 0
    %479 = vmatprep.subr.bf16.mxu0 0
    %480 = vmatpush1.bf16.xpose.msra.mxu0 0
    %481 = vmatprep.subr.bf16.mxu0 0
    %482 = vmatpush1.bf16.xpose.msra.mxu0 0
    %483 = vmatprep.subr.bf16.mxu0 0
    %484 = vmatpush1.bf16.xpose.msra.mxu0 0
    %485 = vmatprep.subr.bf16.mxu0 0
    %486 = vmatpush1.bf16.xpose.msra.mxu0 0
    %487 = vmatprep.subr.bf16.mxu0 0
    %488 = vmatpush1.bf16.xpose.msra.mxu0 0
    %489 = vmatprep.subr.bf16.mxu0 0
    %490 = vmatpush1.bf16.xpose.msra.mxu0 0
    %491 = vmatprep.subr.bf16.mxu0 0
    %492 = vmatpush1.bf16.xpose.msra.mxu0 0
    %493 = vmatprep.subr.bf16.mxu0 0
    %494 = vmatpush1.bf16.xpose.msra.mxu0 0
    %495 = vmatprep.subr.bf16.mxu0 0
    %496 = vmatpush1.bf16.xpose.msra.mxu0 0
    %497 = vmatprep.subr.bf16.mxu0 0
    %498 = vmatpush1.bf16.xpose.msra.mxu0 0
    %499 = vmatprep.subr.bf16.mxu0 0
    %500 = vmatpush1.bf16.xpose.msra.mxu0 0
    %501 = vmatprep.subr.bf16.mxu0 0
    %502 = vmatpush1.bf16.xpose.msra.mxu0 0
    %503 = vmatprep.mubr.bf16.mxu0 0
    %504 = vmatmul.mubr.bf16.gmra.mrb[0].mxu0 %v466
    %v505 = vpop.f32.mrb[0].mxu0
    %v506 = vadd.f32 0.0, %v505
    %v507 = vpop.f32.mrb[0].mxu0
    %v508 = vpop.f32.mrb[0].mxu0
    %v509 = vpop.f32.mrb[0].mxu0
    %510 = vdwg.mxu0
    %v511 = vunpack.c.l.b16 %v163
    %v512 = vpack.c.b16 %v511, %v511
    %513 = vrot.lane.b32.xlu0 %v512, 96
    %v514 = vpop.permute.xlu0 %513
    %v516 = vsel %vm166, %v163, 0
    %v519 = vsel %vm166, %v514, 0
    %521 = vmatprep.subr.bf16.mxu0 0
    %522 = vmatpush1.bf16.xpose.msra.mxu0 %v519
    %523 = vmatprep.subr.bf16.mxu0 0
    %524 = vmatpush1.bf16.xpose.msra.mxu0 0
    %525 = vmatprep.subr.bf16.mxu0 0
    %526 = vmatpush1.bf16.xpose.msra.mxu0 0
    %527 = vmatprep.subr.bf16.mxu0 0
    %528 = vmatpush1.bf16.xpose.msra.mxu0 0
    %529 = vmatprep.subr.bf16.mxu0 0
    %530 = vmatpush1.bf16.xpose.msra.mxu0 0
    %531 = vmatprep.subr.bf16.mxu0 0
    %532 = vmatpush1.bf16.xpose.msra.mxu0 0
    %533 = vmatprep.subr.bf16.mxu0 0
    %534 = vmatpush1.bf16.xpose.msra.mxu0 0
    %535 = vmatprep.subr.bf16.mxu0 0
    %536 = vmatpush1.bf16.xpose.msra.mxu0 0
    %537 = vmatprep.subr.bf16.mxu0 0
    %538 = vmatpush1.bf16.xpose.msra.mxu0 0
    %539 = vmatprep.subr.bf16.mxu0 0
    %540 = vmatpush1.bf16.xpose.msra.mxu0 0
    %541 = vmatprep.subr.bf16.mxu0 0
    %542 = vmatpush1.bf16.xpose.msra.mxu0 0
    %543 = vmatprep.subr.bf16.mxu0 0
    %544 = vmatpush1.bf16.xpose.msra.mxu0 0
    %545 = vmatprep.subr.bf16.mxu0 0
    %546 = vmatpush1.bf16.xpose.msra.mxu0 0
    %547 = vmatprep.subr.bf16.mxu0 0
    %548 = vmatpush1.bf16.xpose.msra.mxu0 0
    %549 = vmatprep.subr.bf16.mxu0 0
    %550 = vmatpush1.bf16.xpose.msra.mxu0 0
    %551 = vmatprep.subr.bf16.mxu0 0
    %552 = vmatpush1.bf16.xpose.msra.mxu0 0
    %553 = vmatprep.mubr.bf16.mxu0 0
    %554 = vmatmul.mubr.bf16.gmra.mrb[0].mxu0 %v516
    %v555 = vpop.f32.mrb[0].mxu0
    %v556 = vadd.f32 0.0, %v555
    %v557 = vpop.f32.mrb[0].mxu0
    %v558 = vpop.f32.mrb[0].mxu0
    %v559 = vpop.f32.mrb[0].mxu0
    %560 = vdwg.mxu0
    %v561 = vmul.f32 %v208, 0.35355338
    %v562 = vmul.f32 %v256, 0.35355338
    %v563 = vmul.f32 %v306, 0.35355338
    %v564 = vmul.f32 %v356, 0.35355338
    %v565 = vmul.f32 %v406, 0.35355338
    %v566 = vmul.f32 %v456, 0.35355338
    %v567 = vmul.f32 %v506, 0.35355338
    %v568 = vmul.f32 %v556, 0.35355338
    %v569 = vld [vmem:[#allocation2] sm:$0xff]
    %vm570 = vcmp.eq.f32.partialorder %v569, 0.0
    %v571 = vsel %vm570, -1e+09, %v561
    %v572 = vsel %vm570, -1e+09, %v562
    %v573 = vsel %vm570, -1e+09, %v563
    %v574 = vsel %vm570, -1e+09, %v564
    %v575 = vsel %vm570, -1e+09, %v565
    %v576 = vsel %vm570, -1e+09, %v566
    %v577 = vsel %vm570, -1e+09, %v567
    %v578 = vsel %vm570, -1e+09, %v568
    %v579 = vsel %vm166, %v571, -inf
    %580 = vmax.xlane.f32.xlu0 %v579
    %v581 = vpop.xlane.xlu0 %580
    %v582 = vsel %vm166, %v572, -inf
    %583 = vmax.xlane.f32.xlu0 %v582
    %v584 = vpop.xlane.xlu0 %583
    %v585 = vsel %vm166, %v573, -inf
    %586 = vmax.xlane.f32.xlu0 %v585
    %v587 = vpop.xlane.xlu0 %586
    %v588 = vsel %vm166, %v574, -inf
    %589 = vmax.xlane.f32.xlu0 %v588
    %v590 = vpop.xlane.xlu0 %589
    %v591 = vsel %vm166, %v575, -inf
    %592 = vmax.xlane.f32.xlu0 %v591
    %v593 = vpop.xlane.xlu0 %592
    %v594 = vsel %vm166, %v576, -inf
    %595 = vmax.xlane.f32.xlu0 %v594
    %v596 = vpop.xlane.xlu0 %595
    %v597 = vsel %vm166, %v577, -inf
    %598 = vmax.xlane.f32.xlu0 %v597
    %v599 = vpop.xlane.xlu0 %598
    %v600 = vsel %vm166, %v578, -inf
    %601 = vmax.xlane.f32.xlu0 %v600
    %v602 = vpop.xlane.xlu0 %601
    %v603 = vsub.f32 %v571, %v581
    %v604 = vsub.f32 %v572, %v584
    %v605 = vsub.f32 %v573, %v587
    %v606 = vsub.f32 %v574, %v590
    %v607 = vsub.f32 %v575, %v593
    %v608 = vsub.f32 %v576, %v596
    %v609 = vsub.f32 %v577, %v599
    %v610 = vsub.f32 %v578, %v602
    %v611 = vmul.f32 %v603, 1.442695
    %v612 = vpow.pop %v611
    %v613 = vmul.f32 %v604, 1.442695
    %v614 = vpow.pop %v613
    %v615 = vmul.f32 %v605, 1.442695
    %v616 = vpow.pop %v615
    %v617 = vmul.f32 %v606, 1.442695
    %v618 = vpow.pop %v617
    %v619 = vmul.f32 %v607, 1.442695
    %v620 = vpow.pop %v619
    %v621 = vmul.f32 %v608, 1.442695
    %v622 = vpow.pop %v621
    %v623 = vmul.f32 %v609, 1.442695
    %v624 = vpow.pop %v623
    %v625 = vmul.f32 %v610, 1.442695
    %v626 = vpow.pop %v625
    %v627 = vsel %vm166, %v612, 0.0
    %628 = vadd.xlane.f32.xlu0 %v627
    %v629 = vpop.xlane.xlu0 %628
    %v630 = vsel %vm166, %v614, 0.0
    %631 = vadd.xlane.f32.xlu0 %v630
    %v632 = vpop.xlane.xlu0 %631
    %v633 = vsel %vm166, %v616, 0.0
    %634 = vadd.xlane.f32.xlu0 %v633
    %v635 = vpop.xlane.xlu0 %634
    %v636 = vsel %vm166, %v618, 0.0
    %637 = vadd.xlane.f32.xlu0 %v636
    %v638 = vpop.xlane.xlu0 %637
    %v639 = vsel %vm166, %v620, 0.0
    %640 = vadd.xlane.f32.xlu0 %v639
    %v641 = vpop.xlane.xlu0 %640
    %v642 = vsel %vm166, %v622, 0.0
    %643 = vadd.xlane.f32.xlu0 %v642
    %v644 = vpop.xlane.xlu0 %643
    %v645 = vsel %vm166, %v624, 0.0
    %646 = vadd.xlane.f32.xlu0 %v645
    %v647 = vpop.xlane.xlu0 %646
    %v648 = vsel %vm166, %v626, 0.0
    %649 = vadd.xlane.f32.xlu0 %v648
    %v650 = vpop.xlane.xlu0 %649
    %v651 = vrcp.pop %v629
    %v652 = vrcp.pop %v632
    %v653 = vrcp.pop %v635
    %v654 = vrcp.pop %v638
    %v655 = vrcp.pop %v641
    %v656 = vrcp.pop %v644
    %v657 = vrcp.pop %v647
    %v658 = vrcp.pop %v650
    %v659 = vmul.f32 %v612, %v651
    %v660 = vmul.f32 %v614, %v652
    %v661 = vmul.f32 %v616, %v653
    %v662 = vmul.f32 %v618, %v654
    %v663 = vmul.f32 %v620, %v655
    %v664 = vmul.f32 %v622, %v656
    %v665 = vmul.f32 %v624, %v657
    %v666 = vmul.f32 %v626, %v658
    %v667 = vpack.c.bf16 %v659, %v659
    %v668 = vpack.c.bf16 %v660, %v660
    %v669 = vpack.c.bf16 %v661, %v661
    %v670 = vpack.c.bf16 %v662, %v662
    %v671 = vpack.c.bf16 %v663, %v663
    %v672 = vpack.c.bf16 %v664, %v664
    %v673 = vpack.c.bf16 %v665, %v665
    %v674 = vpack.c.bf16 %v666, %v666
    %675 = vrot.lane.b32.xlu0 %v150, 64
    %v676 = vpop.permute.xlu0 %675
    %v678 = vsel %vm166, %v667, 0
    %vm680 = vcmask 1043456
    %v682 = vsel %vm680, %v676, 0
    %684 = vmatprep.subr.bf16.mxu0 0
    %685 = vmatpush1.bf16.msra.mxu0 %v682
    %686 = vmatprep.subr.bf16.mxu0 0
    %687 = vmatpush1.bf16.msra.mxu0 0
    %688 = vmatprep.subr.bf16.mxu0 0
    %689 = vmatpush1.bf16.msra.mxu0 0
    %690 = vmatprep.subr.bf16.mxu0 0
    %691 = vmatpush1.bf16.msra.mxu0 0
    %692 = vmatprep.subr.bf16.mxu0 0
    %693 = vmatpush1.bf16.msra.mxu0 0
    %694 = vmatprep.subr.bf16.mxu0 0
    %695 = vmatpush1.bf16.msra.mxu0 0
    %696 = vmatprep.subr.bf16.mxu0 0
    %697 = vmatpush1.bf16.msra.mxu0 0
    %698 = vmatprep.subr.bf16.mxu0 0
    %699 = vmatpush1.bf16.msra.mxu0 0
    %700 = vmatprep.subr.bf16.mxu0 0
    %701 = vmatpush1.bf16.msra.mxu0 0
    %702 = vmatprep.subr.bf16.mxu0 0
    %703 = vmatpush1.bf16.msra.mxu0 0
    %704 = vmatprep.subr.bf16.mxu0 0
    %705 = vmatpush1.bf16.msra.mxu0 0
    %706 = vmatprep.subr.bf16.mxu0 0
    %707 = vmatpush1.bf16.msra.mxu0 0
    %708 = vmatprep.subr.bf16.mxu0 0
    %709 = vmatpush1.bf16.msra.mxu0 0
    %710 = vmatprep.subr.bf16.mxu0 0
    %711 = vmatpush1.bf16.msra.mxu0 0
    %712 = vmatprep.subr.bf16.mxu0 0
    %713 = vmatpush1.bf16.msra.mxu0 0
    %714 = vmatprep.subr.bf16.mxu0 0
    %715 = vmatpush1.bf16.msra.mxu0 0
    %716 = vmatprep.mubr.bf16.mxu0 0
    %717 = vmatmul.mubr.bf16.gmra.mrb[0].mxu0 %v678
    %v718 = vpop.f32.mrb[0].mxu0
    %v719 = vadd.f32 0.0, %v718
    %v720 = vpop.f32.mrb[0].mxu0
    %v721 = vpop.f32.mrb[0].mxu0
    %v722 = vpop.f32.mrb[0].mxu0
    %723 = vdwg.mxu0
    %724 = vrot.lane.b32.xlu0 %v151, 64
    %v725 = vpop.permute.xlu0 %724
    %v727 = vsel %vm166, %v668, 0
    %v730 = vsel %vm680, %v725, 0
    %732 = vmatprep.subr.bf16.mxu0 0
    %733 = vmatpush1.bf16.msra.mxu0 %v730
    %734 = vmatprep.subr.bf16.mxu0 0
    %735 = vmatpush1.bf16.msra.mxu0 0
    %736 = vmatprep.subr.bf16.mxu0 0
    %737 = vmatpush1.bf16.msra.mxu0 0
    %738 = vmatprep.subr.bf16.mxu0 0
    %739 = vmatpush1.bf16.msra.mxu0 0
    %740 = vmatprep.subr.bf16.mxu0 0
    %741 = vmatpush1.bf16.msra.mxu0 0
    %742 = vmatprep.subr.bf16.mxu0 0
    %743 = vmatpush1.bf16.msra.mxu0 0
    %744 = vmatprep.subr.bf16.mxu0 0
    %745 = vmatpush1.bf16.msra.mxu0 0
    %746 = vmatprep.subr.bf16.mxu0 0
    %747 = vmatpush1.bf16.msra.mxu0 0
    %748 = vmatprep.subr.bf16.mxu0 0
    %749 = vmatpush1.bf16.msra.mxu0 0
    %750 = vmatprep.subr.bf16.mxu0 0
    %751 = vmatpush1.bf16.msra.mxu0 0
    %752 = vmatprep.subr.bf16.mxu0 0
    %753 = vmatpush1.bf16.msra.mxu0 0
    %754 = vmatprep.subr.bf16.mxu0 0
    %755 = vmatpush1.bf16.msra.mxu0 0
    %756 = vmatprep.subr.bf16.mxu0 0
    %757 = vmatpush1.bf16.msra.mxu0 0
    %758 = vmatprep.subr.bf16.mxu0 0
    %759 = vmatpush1.bf16.msra.mxu0 0
    %760 = vmatprep.subr.bf16.mxu0 0
    %761 = vmatpush1.bf16.msra.mxu0 0
    %762 = vmatprep.subr.bf16.mxu0 0
    %763 = vmatpush1.bf16.msra.mxu0 0
    %764 = vmatprep.mubr.bf16.mxu0 0
    %765 = vmatmul.mubr.bf16.gmra.mrb[0].mxu0 %v727
    %v766 = vpop.f32.mrb[0].mxu0
    %v767 = vadd.f32 0.0, %v766
    %v768 = vpop.f32.mrb[0].mxu0
    %v769 = vpop.f32.mrb[0].mxu0
    %v770 = vpop.f32.mrb[0].mxu0
    %771 = vdwg.mxu0
    %772 = vrot.lane.b32.xlu0 %v262, 64
    %v773 = vpop.permute.xlu0 %772
    %v775 = vsel %vm166, %v669, 0
    %v778 = vsel %vm680, %v773, 0
    %780 = vmatprep.subr.bf16.mxu0 0
    %781 = vmatpush1.bf16.msra.mxu0 %v778
    %782 = vmatprep.subr.bf16.mxu0 0
    %783 = vmatpush1.bf16.msra.mxu0 0
    %784 = vmatprep.subr.bf16.mxu0 0
    %785 = vmatpush1.bf16.msra.mxu0 0
    %786 = vmatprep.subr.bf16.mxu0 0
    %787 = vmatpush1.bf16.msra.mxu0 0
    %788 = vmatprep.subr.bf16.mxu0 0
    %789 = vmatpush1.bf16.msra.mxu0 0
    %790 = vmatprep.subr.bf16.mxu0 0
    %791 = vmatpush1.bf16.msra.mxu0 0
    %792 = vmatprep.subr.bf16.mxu0 0
    %793 = vmatpush1.bf16.msra.mxu0 0
    %794 = vmatprep.subr.bf16.mxu0 0
    %795 = vmatpush1.bf16.msra.mxu0 0
    %796 = vmatprep.subr.bf16.mxu0 0
    %797 = vmatpush1.bf16.msra.mxu0 0
    %798 = vmatprep.subr.bf16.mxu0 0
    %799 = vmatpush1.bf16.msra.mxu0 0
    %800 = vmatprep.subr.bf16.mxu0 0
    %801 = vmatpush1.bf16.msra.mxu0 0
    %802 = vmatprep.subr.bf16.mxu0 0
    %803 = vmatpush1.bf16.msra.mxu0 0
    %804 = vmatprep.subr.bf16.mxu0 0
    %805 = vmatpush1.bf16.msra.mxu0 0
    %806 = vmatprep.subr.bf16.mxu0 0
    %807 = vmatpush1.bf16.msra.mxu0 0
    %808 = vmatprep.subr.bf16.mxu0 0
    %809 = vmatpush1.bf16.msra.mxu0 0
    %810 = vmatprep.subr.bf16.mxu0 0
    %811 = vmatpush1.bf16.msra.mxu0 0
    %812 = vmatprep.mubr.bf16.mxu0 0
    %813 = vmatmul.mubr.bf16.gmra.mrb[0].mxu0 %v775
    %v814 = vpop.f32.mrb[0].mxu0
    %v815 = vadd.f32 0.0, %v814
    %v816 = vpop.f32.mrb[0].mxu0
    %v817 = vpop.f32.mrb[0].mxu0
    %v818 = vpop.f32.mrb[0].mxu0
    %819 = vdwg.mxu0
    %820 = vrot.lane.b32.xlu0 %v312, 64
    %v821 = vpop.permute.xlu0 %820
    %v823 = vsel %vm166, %v670, 0
    %v826 = vsel %vm680, %v821, 0
    %828 = vmatprep.subr.bf16.mxu0 0
    %829 = vmatpush1.bf16.msra.mxu0 %v826
    %830 = vmatprep.subr.bf16.mxu0 0
    %831 = vmatpush1.bf16.msra.mxu0 0
    %832 = vmatprep.subr.bf16.mxu0 0
    %833 = vmatpush1.bf16.msra.mxu0 0
    %834 = vmatprep.subr.bf16.mxu0 0
    %835 = vmatpush1.bf16.msra.mxu0 0
    %836 = vmatprep.subr.bf16.mxu0 0
    %837 = vmatpush1.bf16.msra.mxu0 0
    %838 = vmatprep.subr.bf16.mxu0 0
    %839 = vmatpush1.bf16.msra.mxu0 0
    %840 = vmatprep.subr.bf16.mxu0 0
    %841 = vmatpush1.bf16.msra.mxu0 0
    %842 = vmatprep.subr.bf16.mxu0 0
    %843 = vmatpush1.bf16.msra.mxu0 0
    %844 = vmatprep.subr.bf16.mxu0 0
    %845 = vmatpush1.bf16.msra.mxu0 0
    %846 = vmatprep.subr.bf16.mxu0 0
    %847 = vmatpush1.bf16.msra.mxu0 0
    %848 = vmatprep.subr.bf16.mxu0 0
    %849 = vmatpush1.bf16.msra.mxu0 0
    %850 = vmatprep.subr.bf16.mxu0 0
    %851 = vmatpush1.bf16.msra.mxu0 0
    %852 = vmatprep.subr.bf16.mxu0 0
    %853 = vmatpush1.bf16.msra.mxu0 0
    %854 = vmatprep.subr.bf16.mxu0 0
    %855 = vmatpush1.bf16.msra.mxu0 0
    %856 = vmatprep.subr.bf16.mxu0 0
    %857 = vmatpush1.bf16.msra.mxu0 0
    %858 = vmatprep.subr.bf16.mxu0 0
    %859 = vmatpush1.bf16.msra.mxu0 0
    %860 = vmatprep.mubr.bf16.mxu0 0
    %861 = vmatmul.mubr.bf16.gmra.mrb[0].mxu0 %v823
    %v862 = vpop.f32.mrb[0].mxu0
    %v863 = vadd.f32 0.0, %v862
    %v864 = vpop.f32.mrb[0].mxu0
    %v865 = vpop.f32.mrb[0].mxu0
    %v866 = vpop.f32.mrb[0].mxu0
    %867 = vdwg.mxu0
    %868 = vrot.lane.b32.xlu0 %v362, 64
    %v869 = vpop.permute.xlu0 %868
    %v871 = vsel %vm166, %v671, 0
    %v874 = vsel %vm680, %v869, 0
    %876 = vmatprep.subr.bf16.mxu0 0
    %877 = vmatpush1.bf16.msra.mxu0 %v874
    %878 = vmatprep.subr.bf16.mxu0 0
    %879 = vmatpush1.bf16.msra.mxu0 0
    %880 = vmatprep.subr.bf16.mxu0 0
    %881 = vmatpush1.bf16.msra.mxu0 0
    %882 = vmatprep.subr.bf16.mxu0 0
    %883 = vmatpush1.bf16.msra.mxu0 0
    %884 = vmatprep.subr.bf16.mxu0 0
    %885 = vmatpush1.bf16.msra.mxu0 0
    %886 = vmatprep.subr.bf16.mxu0 0
    %887 = vmatpush1.bf16.msra.mxu0 0
    %888 = vmatprep.subr.bf16.mxu0 0
    %889 = vmatpush1.bf16.msra.mxu0 0
    %890 = vmatprep.subr.bf16.mxu0 0
    %891 = vmatpush1.bf16.msra.mxu0 0
    %892 = vmatprep.subr.bf16.mxu0 0
    %893 = vmatpush1.bf16.msra.mxu0 0
    %894 = vmatprep.subr.bf16.mxu0 0
    %895 = vmatpush1.bf16.msra.mxu0 0
    %896 = vmatprep.subr.bf16.mxu0 0
    %897 = vmatpush1.bf16.msra.mxu0 0
    %898 = vmatprep.subr.bf16.mxu0 0
    %899 = vmatpush1.bf16.msra.mxu0 0
    %900 = vmatprep.subr.bf16.mxu0 0
    %901 = vmatpush1.bf16.msra.mxu0 0
    %902 = vmatprep.subr.bf16.mxu0 0
    %903 = vmatpush1.bf16.msra.mxu0 0
    %904 = vmatprep.subr.bf16.mxu0 0
    %905 = vmatpush1.bf16.msra.mxu0 0
    %906 = vmatprep.subr.bf16.mxu0 0
    %907 = vmatpush1.bf16.msra.mxu0 0
    %908 = vmatprep.mubr.bf16.mxu0 0
    %909 = vmatmul.mubr.bf16.gmra.mrb[0].mxu0 %v871
    %v910 = vpop.f32.mrb[0].mxu0
    %v911 = vadd.f32 0.0, %v910
    %v912 = vpop.f32.mrb[0].mxu0
    %v913 = vpop.f32.mrb[0].mxu0
    %v914 = vpop.f32.mrb[0].mxu0
    %915 = vdwg.mxu0
    %916 = vrot.lane.b32.xlu0 %v412, 64
    %v917 = vpop.permute.xlu0 %916
    %v919 = vsel %vm166, %v672, 0
    %v922 = vsel %vm680, %v917, 0
    %924 = vmatprep.subr.bf16.mxu0 0
    %925 = vmatpush1.bf16.msra.mxu0 %v922
    %926 = vmatprep.subr.bf16.mxu0 0
    %927 = vmatpush1.bf16.msra.mxu0 0
    %928 = vmatprep.subr.bf16.mxu0 0
    %929 = vmatpush1.bf16.msra.mxu0 0
    %930 = vmatprep.subr.bf16.mxu0 0
    %931 = vmatpush1.bf16.msra.mxu0 0
    %932 = vmatprep.subr.bf16.mxu0 0
    %933 = vmatpush1.bf16.msra.mxu0 0
    %934 = vmatprep.subr.bf16.mxu0 0
    %935 = vmatpush1.bf16.msra.mxu0 0
    %936 = vmatprep.subr.bf16.mxu0 0
    %937 = vmatpush1.bf16.msra.mxu0 0
    %938 = vmatprep.subr.bf16.mxu0 0
    %939 = vmatpush1.bf16.msra.mxu0 0
    %940 = vmatprep.subr.bf16.mxu0 0
    %941 = vmatpush1.bf16.msra.mxu0 0
    %942 = vmatprep.subr.bf16.mxu0 0
    %943 = vmatpush1.bf16.msra.mxu0 0
    %944 = vmatprep.subr.bf16.mxu0 0
    %945 = vmatpush1.bf16.msra.mxu0 0
    %946 = vmatprep.subr.bf16.mxu0 0
    %947 = vmatpush1.bf16.msra.mxu0 0
    %948 = vmatprep.subr.bf16.mxu0 0
    %949 = vmatpush1.bf16.msra.mxu0 0
    %950 = vmatprep.subr.bf16.mxu0 0
    %951 = vmatpush1.bf16.msra.mxu0 0
    %952 = vmatprep.subr.bf16.mxu0 0
    %953 = vmatpush1.bf16.msra.mxu0 0
    %954 = vmatprep.subr.bf16.mxu0 0
    %955 = vmatpush1.bf16.msra.mxu0 0
    %956 = vmatprep.mubr.bf16.mxu0 0
    %957 = vmatmul.mubr.bf16.gmra.mrb[0].mxu0 %v919
    %v958 = vpop.f32.mrb[0].mxu0
    %v959 = vadd.f32 0.0, %v958
    %v960 = vpop.f32.mrb[0].mxu0
    %v961 = vpop.f32.mrb[0].mxu0
    %v962 = vpop.f32.mrb[0].mxu0
    %963 = vdwg.mxu0
    %964 = vrot.lane.b32.xlu0 %v462, 64
    %v965 = vpop.permute.xlu0 %964
    %v967 = vsel %vm166, %v673, 0
    %v970 = vsel %vm680, %v965, 0
    %972 = vmatprep.subr.bf16.mxu0 0
    %973 = vmatpush1.bf16.msra.mxu0 %v970
    %974 = vmatprep.subr.bf16.mxu0 0
    %975 = vmatpush1.bf16.msra.mxu0 0
    %976 = vmatprep.subr.bf16.mxu0 0
    %977 = vmatpush1.bf16.msra.mxu0 0
    %978 = vmatprep.subr.bf16.mxu0 0
    %979 = vmatpush1.bf16.msra.mxu0 0
    %980 = vmatprep.subr.bf16.mxu0 0
    %981 = vmatpush1.bf16.msra.mxu0 0
    %982 = vmatprep.subr.bf16.mxu0 0
    %983 = vmatpush1.bf16.msra.mxu0 0
    %984 = vmatprep.subr.bf16.mxu0 0
    %985 = vmatpush1.bf16.msra.mxu0 0
    %986 = vmatprep.subr.bf16.mxu0 0
    %987 = vmatpush1.bf16.msra.mxu0 0
    %988 = vmatprep.subr.bf16.mxu0 0
    %989 = vmatpush1.bf16.msra.mxu0 0
    %990 = vmatprep.subr.bf16.mxu0 0
    %991 = vmatpush1.bf16.msra.mxu0 0
    %992 = vmatprep.subr.bf16.mxu0 0
    %993 = vmatpush1.bf16.msra.mxu0 0
    %994 = vmatprep.subr.bf16.mxu0 0
    %995 = vmatpush1.bf16.msra.mxu0 0
    %996 = vmatprep.subr.bf16.mxu0 0
    %997 = vmatpush1.bf16.msra.mxu0 0
    %998 = vmatprep.subr.bf16.mxu0 0
    %999 = vmatpush1.bf16.msra.mxu0 0
    %1000 = vmatprep.subr.bf16.mxu0 0
    %1001 = vmatpush1.bf16.msra.mxu0 0
    %1002 = vmatprep.subr.bf16.mxu0 0
    %1003 = vmatpush1.bf16.msra.mxu0 0
    %1004 = vmatprep.mubr.bf16.mxu0 0
    %1005 = vmatmul.mubr.bf16.gmra.mrb[0].mxu0 %v967
    %v1006 = vpop.f32.mrb[0].mxu0
    %v1007 = vadd.f32 0.0, %v1006
    %v1008 = vpop.f32.mrb[0].mxu0
    %v1009 = vpop.f32.mrb[0].mxu0
    %v1010 = vpop.f32.mrb[0].mxu0
    %1011 = vdwg.mxu0
    %1012 = vrot.lane.b32.xlu0 %v512, 64
    %v1013 = vpop.permute.xlu0 %1012
    %v1015 = vsel %vm166, %v674, 0
    %v1018 = vsel %vm680, %v1013, 0
    %1020 = vmatprep.subr.bf16.mxu0 0
    %1021 = vmatpush1.bf16.msra.mxu0 %v1018
    %1022 = vmatprep.subr.bf16.mxu0 0
    %1023 = vmatpush1.bf16.msra.mxu0 0
    %1024 = vmatprep.subr.bf16.mxu0 0
    %1025 = vmatpush1.bf16.msra.mxu0 0
    %1026 = vmatprep.subr.bf16.mxu0 0
    %1027 = vmatpush1.bf16.msra.mxu0 0
    %1028 = vmatprep.subr.bf16.mxu0 0
    %1029 = vmatpush1.bf16.msra.mxu0 0
    %1030 = vmatprep.subr.bf16.mxu0 0
    %1031 = vmatpush1.bf16.msra.mxu0 0
    %1032 = vmatprep.subr.bf16.mxu0 0
    %1033 = vmatpush1.bf16.msra.mxu0 0
    %1034 = vmatprep.subr.bf16.mxu0 0
    %1035 = vmatpush1.bf16.msra.mxu0 0
    %1036 = vmatprep.subr.bf16.mxu0 0
    %1037 = vmatpush1.bf16.msra.mxu0 0
    %1038 = vmatprep.subr.bf16.mxu0 0
    %1039 = vmatpush1.bf16.msra.mxu0 0
    %1040 = vmatprep.subr.bf16.mxu0 0
    %1041 = vmatpush1.bf16.msra.mxu0 0
    %1042 = vmatprep.subr.bf16.mxu0 0
    %1043 = vmatpush1.bf16.msra.mxu0 0
    %1044 = vmatprep.subr.bf16.mxu0 0
    %1045 = vmatpush1.bf16.msra.mxu0 0
    %1046 = vmatprep.subr.bf16.mxu0 0
    %1047 = vmatpush1.bf16.msra.mxu0 0
    %1048 = vmatprep.subr.bf16.mxu0 0
    %1049 = vmatpush1.bf16.msra.mxu0 0
    %1050 = vmatprep.subr.bf16.mxu0 0
    %1051 = vmatpush1.bf16.msra.mxu0 0
    %1052 = vmatprep.mubr.bf16.mxu0 0
    %1053 = vmatmul.mubr.bf16.gmra.mrb[0].mxu0 %v1015
    %v1054 = vpop.f32.mrb[0].mxu0
    %v1055 = vadd.f32 0.0, %v1054
    %v1056 = vpop.f32.mrb[0].mxu0
    %v1057 = vpop.f32.mrb[0].mxu0
    %v1058 = vpop.f32.mrb[0].mxu0
    %1059 = vdwg.mxu0
    %1062 = vrot.lane.b32.xlu0 %v815, 8
    %v1063 = vpop.permute.xlu0 %1062
    %1064 = vrot.lane.b32.xlu0 %v863, 8
    %v1065 = vpop.permute.xlu0 %1064
    %1070 = vrot.lane.b32.xlu0 %v911, 16
    %v1071 = vpop.permute.xlu0 %1070
    %1072 = vrot.lane.b32.xlu0 %v959, 16
    %v1073 = vpop.permute.xlu0 %1072
    %1078 = vrot.lane.b32.xlu0 %v1007, 24
    %v1079 = vpop.permute.xlu0 %1078
    %1080 = vrot.lane.b32.xlu0 %v1055, 24
    %v1081 = vpop.permute.xlu0 %1080
    %v1084 = vsel %vm166, %v719, %v1063
    %v1085 = vsel %vm166, %v767, %v1065
    %vm1086 = vcmask 130048
    %v1087 = vsel %vm1086, %v1084, %v1071
    %v1088 = vsel %vm1086, %v1085, %v1073
    %vm1089 = vcmask 195584
    %v1090 = vsel %vm1089, %v1087, %v1079
    %v1091 = vsel %vm1089, %v1088, %v1081
    %v1092 = vpack.c.bf16 %v1091, %v1090
    %v1093 = vld [vmem:[%s4] sm:$0xf]
    %v1094 = vld [vmem:[%s4 + $0x4] sm:$0xf]
    %v1095 = vld [vmem:[%s4 + $0x8] sm:$0xf]
    %v1096 = vld [vmem:[%s4 + $0xc] sm:$0xf]
    %v1097 = vld [vmem:[%s5] sm:$0x1]
    %v1099 = vlaneseq
    %v1100 = vshrl.u32 %v1099, 7
    %v1101 = vsub.s32 0, %v1100
    %v1102 = vrot.slane %v1097, %v1101
    %v1108 = vunpack.c.l.b16 %v1093
    %v1109 = vunpack.c.l.b16 %v1094
    %v1110 = vunpack.c.l.b16 %v1095
    %v1111 = vunpack.c.l.b16 %v1096
    %v1112 = vpack.c.b16 %v1109, %v1108
    %v1113 = vpack.c.b16 %v1111, %v1110
    %v1117 = vsel %vm101, %v1092, 0
    %1119 = vmatprep.subr.bf16.mxu0 0
    %1120 = vmatpush1.bf16.msra.mxu0 %v1112
    %1121 = vmatprep.subr.bf16.mxu0 0
    %1122 = vmatpush1.bf16.msra.mxu0 %v1113
    %1123 = vmatprep.subr.bf16.mxu0 0
    %1124 = vmatpush1.bf16.msra.mxu0 0
    %1125 = vmatprep.subr.bf16.mxu0 0
    %1126 = vmatpush1.bf16.msra.mxu0 0
    %1127 = vmatprep.subr.bf16.mxu0 0
    %1128 = vmatpush1.bf16.msra.mxu0 0
    %1129 = vmatprep.subr.bf16.mxu0 0
    %1130 = vmatpush1.bf16.msra.mxu0 0
    %1131 = vmatprep.subr.bf16.mxu0 0
    %1132 = vmatpush1.bf16.msra.mxu0 0
    %1133 = vmatprep.subr.bf16.mxu0 0
    %1134 = vmatpush1.bf16.msra.mxu0 0
    %1135 = vmatprep.subr.bf16.mxu0 0
    %1136 = vmatpush1.bf16.msra.mxu0 0
    %1137 = vmatprep.subr.bf16.mxu0 0
    %1138 = vmatpush1.bf16.msra.mxu0 0
    %1139 = vmatprep.subr.bf16.mxu0 0
    %1140 = vmatpush1.bf16.msra.mxu0 0
    %1141 = vmatprep.subr.bf16.mxu0 0
    %1142 = vmatpush1.bf16.msra.mxu0 0
    %1143 = vmatprep.subr.bf16.mxu0 0
    %1144 = vmatpush1.bf16.msra.mxu0 0
    %1145 = vmatprep.subr.bf16.mxu0 0
    %1146 = vmatpush1.bf16.msra.mxu0 0
    %1147 = vmatprep.subr.bf16.mxu0 0
    %1148 = vmatpush1.bf16.msra.mxu0 0
    %1149 = vmatprep.subr.bf16.mxu0 0
    %1150 = vmatpush1.bf16.msra.mxu0 0
    %1151 = vmatprep.mubr.bf16.mxu0 0
    %1152 = vmatmul.mubr.bf16.gmra.mrb[0].mxu0 %v1117
    %v1153 = vpop.f32.mrb[0].mxu0
    %v1154 = vadd.f32 %v1102, %v1153
    %v1155 = vpop.f32.mrb[0].mxu0
    %v1156 = vpop.f32.mrb[0].mxu0
    %v1157 = vadd.f32 %v1102, %v1156
    %v1158 = vpop.f32.mrb[0].mxu0
    %1159 = vdwg.mxu0
    %v1160 = vadd.f32 %v75, %v1154
    %v1161 = vadd.f32 %v76, %v1157
    %v1162 = vld [vmem:[%s10] sm:$0x1]
    %v1163 = vld [vmem:[%s11] sm:$0x1]
    %v1164 = vsel %vm101, %v1160, 0.0
    %1165 = vadd.xlane.f32.xlu0 %v1164
    %v1166 = vpop.xlane.xlu0 %1165
    %v1167 = vsel %vm101, %v1161, 0.0
    %1168 = vadd.xlane.f32.xlu0 %v1167
    %v1169 = vpop.xlane.xlu0 %1168
    %v1170 = vrcp.pop 32.0
    %v1171 = vmul.f32 %v1166, %v1170
    %v1172 = vmul.f32 %v1169, %v1170
    %v1173 = vsub.f32 %v1160, %v1171
    %v1174 = vsub.f32 %v1161, %v1172
    %v1175 = vmul.f32 %v1173, %v1173
    %v1176 = vmul.f32 %v1174, %v1174
    %v1177 = vsel %vm101, %v1175, 0.0
    %1178 = vadd.xlane.f32.xlu0 %v1177
    %v1179 = vpop.xlane.xlu0 %1178
    %v1180 = vsel %vm101, %v1176, 0.0
    %1181 = vadd.xlane.f32.xlu0 %v1180
    %v1182 = vpop.xlane.xlu0 %1181
    %v1183 = vmul.f32 %v1179, %v1170
    %v1184 = vmul.f32 %v1182, %v1170
    %v1185 = vadd.f32 %v1183, 1e-05
    %v1186 = vadd.f32 %v1184, 1e-05
    %v1187 = vrsqrt.pop %v1185
    %v1188 = vrsqrt.pop %v1186
    %v1189 = vmul.f32 %v1173, %v1187
    %v1190 = vmul.f32 %v1174, %v1188
    %v1192 = vlaneseq
    %v1193 = vshrl.u32 %v1192, 7
    %v1194 = vsub.s32 0, %v1193
    %v1195 = vrot.slane %v1162, %v1194
    %v1197 = vmul.f32 %v1189, %v1195
    %v1198 = vmul.f32 %v1190, %v1195
    %v1200 = vlaneseq
    %v1201 = vshrl.u32 %v1200, 7
    %v1202 = vsub.s32 0, %v1201
    %v1203 = vrot.slane %v1163, %v1202
    %v1205 = vadd.f32 %v1197, %v1203
    %v1206 = vadd.f32 %v1198, %v1203
    %v1207 = vpack.c.bf16 %v1206, %v1205
    %v1208 = vld [vmem:[#allocation5] sm:$0xf]
    %v1209 = vld [vmem:[#allocation5 + $0x4] sm:$0xf]
    %v1210 = vld [vmem:[#allocation5 + $0x8] sm:$0xf]
    %v1211 = vld [vmem:[#allocation5 + $0xc] sm:$0xf]
    %v1212 = vld [vmem:[%s7] sm:$0x1]
    %v1214 = vlaneseq
    %v1215 = vshrl.u32 %v1214, 7
    %v1216 = vsub.s32 0, %v1215
    %v1217 = vrot.slane %v1212, %v1216
    %v1223 = vunpack.c.l.b16 %v1208
    %v1224 = vunpack.c.l.b16 %v1209
    %v1225 = vunpack.c.l.b16 %v1210
    %v1226 = vunpack.c.l.b16 %v1211
    %v1227 = vpack.c.b16 %v1224, %v1223
    %v1228 = vpack.c.b16 %v1226, %v1225
    %v1232 = vsel %vm101, %v1207, 0
    %1234 = vmatprep.subr.bf16.mxu0 0
    %1235 = vmatpush1.bf16.msra.mxu0 %v1227
    %1236 = vmatprep.subr.bf16.mxu0 0
    %1237 = vmatpush1.bf16.msra.mxu0 %v1228
    %1238 = vmatprep.subr.bf16.mxu0 0
    %1239 = vmatpush1.bf16.msra.mxu0 0
    %1240 = vmatprep.subr.bf16.mxu0 0
    %1241 = vmatpush1.bf16.msra.mxu0 0
    %1242 = vmatprep.subr.bf16.mxu0 0
    %1243 = vmatpush1.bf16.msra.mxu0 0
    %1244 = vmatprep.subr.bf16.mxu0 0
    %1245 = vmatpush1.bf16.msra.mxu0 0
    %1246 = vmatprep.subr.bf16.mxu0 0
    %1247 = vmatpush1.bf16.msra.mxu0 0
    %1248 = vmatprep.subr.bf16.mxu0 0
    %1249 = vmatpush1.bf16.msra.mxu0 0
    %1250 = vmatprep.subr.bf16.mxu0 0
    %1251 = vmatpush1.bf16.msra.mxu0 0
    %1252 = vmatprep.subr.bf16.mxu0 0
    %1253 = vmatpush1.bf16.msra.mxu0 0
    %1254 = vmatprep.subr.bf16.mxu0 0
    %1255 = vmatpush1.bf16.msra.mxu0 0
    %1256 = vmatprep.subr.bf16.mxu0 0
    %1257 = vmatpush1.bf16.msra.mxu0 0
    %1258 = vmatprep.subr.bf16.mxu0 0
    %1259 = vmatpush1.bf16.msra.mxu0 0
    %1260 = vmatprep.subr.bf16.mxu0 0
    %1261 = vmatpush1.bf16.msra.mxu0 0
    %1262 = vmatprep.subr.bf16.mxu0 0
    %1263 = vmatpush1.bf16.msra.mxu0 0
    %1264 = vmatprep.subr.bf16.mxu0 0
    %1265 = vmatpush1.bf16.msra.mxu0 0
    %1266 = vmatprep.mubr.bf16.mxu0 0
    %1267 = vmatmul.mubr.bf16.gmra.mrb[0].mxu0 %v1232
    %v1268 = vpop.f32.mrb[0].mxu0
    %v1269 = vadd.f32 %v1217, %v1268
    %v1270 = vpop.f32.mrb[0].mxu0
    %v1271 = vpop.f32.mrb[0].mxu0
    %v1272 = vadd.f32 %v1217, %v1271
    %v1273 = vpop.f32.mrb[0].mxu0
    %1274 = vdwg.mxu0
    %v1275 = vmax.f32 %v1269, 0.0
    %v1276 = vmax.f32 %v1272, 0.0
    %v1277 = vpack.c.bf16 %v1276, %v1275
    %v1278 = vld [vmem:[%s8] sm:$0xf]
    %v1279 = vld [vmem:[%s8 + $0x4] sm:$0xf]
    %v1280 = vld [vmem:[%s8 + $0x8] sm:$0xf]
    %v1281 = vld [vmem:[%s8 + $0xc] sm:$0xf]
    %v1282 = vld [vmem:[%s8 + $0x10] sm:$0xf]
    %v1283 = vld [vmem:[%s8 + $0x14] sm:$0xf]
    %v1284 = vld [vmem:[%s8 + $0x18] sm:$0xf]
    %v1285 = vld [vmem:[%s8 + $0x1c] sm:$0xf]
    %v1286 = vld [vmem:[%s9] sm:$0x1]
    %v1288 = vlaneseq
    %v1289 = vshrl.u32 %v1288, 7
    %v1290 = vsub.s32 0, %v1289
    %v1291 = vrot.slane %v1286, %v1290
    %v1301 = vunpack.c.l.b16 %v1278
    %v1302 = vunpack.c.l.b16 %v1279
    %v1303 = vunpack.c.l.b16 %v1280
    %v1304 = vunpack.c.l.b16 %v1281
    %v1305 = vunpack.c.l.b16 %v1282
    %v1306 = vunpack.c.l.b16 %v1283
    %v1307 = vunpack.c.l.b16 %v1284
    %v1308 = vunpack.c.l.b16 %v1285
    %v1309 = vpack.c.b16 %v1302, %v1301
    %v1310 = vpack.c.b16 %v1304, %v1303
    %v1311 = vpack.c.b16 %v1306, %v1305
    %v1312 = vpack.c.b16 %v1308, %v1307
    %vm1317 = vcmask 523264
    %v1319 = vsel %vm1317, %v1277, 0
    %1321 = vmatprep.subr.bf16.mxu0 0
    %1322 = vmatpush1.bf16.msra.mxu0 %v1309
    %1323 = vmatprep.subr.bf16.mxu0 0
    %1324 = vmatpush1.bf16.msra.mxu0 %v1310
    %1325 = vmatprep.subr.bf16.mxu0 0
    %1326 = vmatpush1.bf16.msra.mxu0 %v1311
    %1327 = vmatprep.subr.bf16.mxu0 0
    %1328 = vmatpush1.bf16.msra.mxu0 %v1312
    %1329 = vmatprep.subr.bf16.mxu0 0
    %1330 = vmatpush1.bf16.msra.mxu0 0
    %1331 = vmatprep.subr.bf16.mxu0 0
    %1332 = vmatpush1.bf16.msra.mxu0 0
    %1333 = vmatprep.subr.bf16.mxu0 0
    %1334 = vmatpush1.bf16.msra.mxu0 0
    %1335 = vmatprep.subr.bf16.mxu0 0
    %1336 = vmatpush1.bf16.msra.mxu0 0
    %1337 = vmatprep.subr.bf16.mxu0 0
    %1338 = vmatpush1.bf16.msra.mxu0 0
    %1339 = vmatprep.subr.bf16.mxu0 0
    %1340 = vmatpush1.bf16.msra.mxu0 0
    %1341 = vmatprep.subr.bf16.mxu0 0
    %1342 = vmatpush1.bf16.msra.mxu0 0
    %1343 = vmatprep.subr.bf16.mxu0 0
    %1344 = vmatpush1.bf16.msra.mxu0 0
    %1345 = vmatprep.subr.bf16.mxu0 0
    %1346 = vmatpush1.bf16.msra.mxu0 0
    %1347 = vmatprep.subr.bf16.mxu0 0
    %1348 = vmatpush1.bf16.msra.mxu0 0
    %1349 = vmatprep.subr.bf16.mxu0 0
    %1350 = vmatpush1.bf16.msra.mxu0 0
    %1351 = vmatprep.subr.bf16.mxu0 0
    %1352 = vmatpush1.bf16.msra.mxu0 0
    %1353 = vmatprep.mubr.bf16.mxu0 0
    %1354 = vmatmul.mubr.bf16.gmra.mrb[0].mxu0 %v1319
    %v1355 = vpop.f32.mrb[0].mxu0
    %v1356 = vadd.f32 %v1291, %v1355
    %v1357 = vpop.f32.mrb[0].mxu0
    %v1358 = vpop.f32.mrb[0].mxu0
    %v1359 = vadd.f32 %v1291, %v1358
    %v1360 = vpop.f32.mrb[0].mxu0
    %1361 = vdwg.mxu0
    %v1362 = vadd.f32 %v1205, %v1356
    %v1363 = vadd.f32 %v1206, %v1359
    %v1364 = vld [vmem:[%s12] sm:$0x1]
    %v1365 = vld [vmem:[%s13] sm:$0x1]
    %v1366 = vsel %vm101, %v1362, 0.0
    %1367 = vadd.xlane.f32.xlu0 %v1366
    %v1368 = vpop.xlane.xlu0 %1367
    %v1369 = vsel %vm101, %v1363, 0.0
    %1370 = vadd.xlane.f32.xlu0 %v1369
    %v1371 = vpop.xlane.xlu0 %1370
    %v1372 = vmul.f32 %v1368, %v1170
    %v1373 = vmul.f32 %v1371, %v1170
    %v1374 = vsub.f32 %v1362, %v1372
    %v1375 = vsub.f32 %v1363, %v1373
    %v1376 = vmul.f32 %v1374, %v1374
    %v1377 = vmul.f32 %v1375, %v1375
    %v1378 = vsel %vm101, %v1376, 0.0
    %1379 = vadd.xlane.f32.xlu0 %v1378
    %v1380 = vpop.xlane.xlu0 %1379
    %v1381 = vsel %vm101, %v1377, 0.0
    %1382 = vadd.xlane.f32.xlu0 %v1381
    %v1383 = vpop.xlane.xlu0 %1382
    %v1384 = vmul.f32 %v1380, %v1170
    %v1385 = vmul.f32 %v1383, %v1170
    %v1386 = vadd.f32 %v1384, 1e-05
    %v1387 = vadd.f32 %v1385, 1e-05
    %v1388 = vrsqrt.pop %v1386
    %v1389 = vrsqrt.pop %v1387
    %v1390 = vmul.f32 %v1374, %v1388
    %v1391 = vmul.f32 %v1375, %v1389
    %v1393 = vlaneseq
    %v1394 = vshrl.u32 %v1393, 7
    %v1395 = vsub.s32 0, %v1394
    %v1396 = vrot.slane %v1364, %v1395
    %v1398 = vmul.f32 %v1390, %v1396
    %v1399 = vmul.f32 %v1391, %v1396
    %v1401 = vlaneseq
    %v1402 = vshrl.u32 %v1401, 7
    %v1403 = vsub.s32 0, %v1402
    %v1404 = vrot.slane %v1365, %v1403
    %v1406 = vadd.f32 %v1398, %v1404
    %v1407 = vadd.f32 %v1399, %v1404
    %1408 = vst.msk [vmem:[#allocation7] sm:$0xff] %vm101, %v1406
    %1409 = vst.msk [vmem:[#allocation7 + $0x8] sm:$0xff] %vm101, %v1407
    // Predicated region
    $region66: #{tpu_custom_call.1} parent=1 // pred_check
      _
    $region67: #{tpu_custom_call.1} parent=1 // pred_check_branch
      %1411 = sbr.rel (0) target = $region69
    $region68: #{tpu_custom_call.1} parent=1 // pred_region
      %s1413 = ssub.s32 256, 256
      %1414 = vsyncadd [#allocation4], %s1413
      %s1415 = sshll.u32 [#allocation7], 4
      %s1416 = int_to_ptr.vmem [resolvable:$true] %s1415
      %1421 = dma.vmem_to_hbm [thread:$0]  %s1416, 256, %s14, [#allocation4], 128, 128, 8
    $region69: #{tpu_custom_call.1} parent=1 // pred_fallthru
      _
    // Predicated region
    $region70: #{tpu_custom_call.1} parent=1 // pred_check
      _
    $region71: #{tpu_custom_call.1} parent=1 // pred_check_branch
      %1423 = sbr.rel (0) target = $region73
    $region72: #{tpu_custom_call.1} parent=1 // pred_region
      %1424 = dma.done [#allocation4], 256
    $region73: #{tpu_custom_call.1} parent=1 // pred_fallthru
      _
    %1425 = vsyncpa [#allocation3], 1
    %1426 = vsyncpa [#allocation6], 1
    %1427 = vsyncpa [#allocation4], 1

</llo_original>
